<compile_context>
chip_gen: v7x
topology: tpu7x:2x2x1
jax: 0.10.0
libtpu: 0.0.40
codegen_flags: <defaults>
</compile_context>

<pallas_src>
import jax
import jax.numpy as jnp
from jax import lax
from jax.experimental import pallas as pl
from jax.experimental.pallas import tpu as pltpu

DIM_IN = 16
DIM_HIDDEN = 32
TOPK = 4
N_CLASSES = 2
N_NODES = 8
CT_LEN = 5

SCALE = DIM_HIDDEN ** (-0.5)
NEG_SLOPE = 0.01      # nn.LeakyReLU default
LN_EPS = 1e-5         # nn.LayerNorm default

D = DIM_HIDDEN
H = DIM_HIDDEN // 2

# ---- single packed parameter slab, shape [128, 2*D] = [128, 64] ----
# Sublane-major layout: every block starts at a row multiple of 8 and at lane 0.
_SLAB_COLS = 2 * D
_ROW_WHWT = 0       # rows   0: 32  [W_head | W_tail]              [32, 64]
_ROW_LIN12 = 32     # rows  32: 64  [linear1 | linear2]            [32, 64]
_ROW_ATT1 = 64      # rows  64: 96  att1 (padded 16 -> 64 lanes)   [32, 64]
_ROW_FC1 = 96       # rows  96:112  fc1                            [16, 32]
_ROW_BIAS = 112     # rows 112:128  bias / small-vector block      [16, 64]
_SLAB_ROWS = 128

# rows inside the bias block (relative to _ROW_BIAS)
_B_FC1 = 0       # fc1 bias                       lanes 0:32
_B_WHWT = 1      # [W_head bias | W_tail bias]    lanes 0:64
_B_LIN12 = 2     # [linear1 bias | linear2 bias]  lanes 0:64
_B_ATT1 = 3      # att1 bias (padded)             lanes 0:64
_B_ATT2W = 4     # att2 weight^T (padded)         lanes 0:64
_B_ATT2B = 5     # att2 bias                      lane 0
_B_LNG = 6       # LayerNorm gamma                lanes 0:32
_B_LNB = 7       # LayerNorm beta                 lanes 0:32
_B_FCW0 = 8      # classifier weight col 0        lanes 0:32
_B_FCW1 = 9      # classifier weight col 1        lanes 0:32
_B_FCB = 10      # classifier bias                lanes 0:2


def _leaky_relu(x):
    return jnp.where(x >= 0, x, NEG_SLOPE * x)


def _softmax_lanes(v):
    m = jnp.max(v, axis=-1, keepdims=True)
    e = jnp.exp(v - m)
    return e / jnp.sum(e, axis=-1, keepdims=True)


def wikg_kernel(x_ref, s_ref, out_ref):
    N, K = N_NODES, TOPK

    x = x_ref[...]                                           # [8, 16]

    # tile-aligned zero-copy slices of the packed slab (sublane starts are multiples of 8,
    # lane starts are 0)
    whwt_w = s_ref[_ROW_WHWT:_ROW_WHWT + D, :]               # [32, 64] = [W_head | W_tail]
    lin12_w = s_ref[_ROW_LIN12:_ROW_LIN12 + D, :]            # [32, 64] = [lin1 | lin2]
    att1_w = s_ref[_ROW_ATT1:_ROW_ATT1 + D, :]               # [32, 64] (lanes 16: are zero)
    fc1_w = s_ref[_ROW_FC1:_ROW_FC1 + DIM_IN, 0:D]           # [16, 32]
    Bv = s_ref[_ROW_BIAS:_ROW_BIAS + 16, :]                  # [16, 64] bias/vector block

    fc1_b = Bv[_B_FC1:_B_FC1 + 1, 0:D]
    whwt_b = Bv[_B_WHWT:_B_WHWT + 1, :]                      # [1, 64] = [wh_b | wt_b]
    lin12_b = Bv[_B_LIN12:_B_LIN12 + 1, :]                   # [1, 64] = [lin1_b | lin2_b]
    att1_b = Bv[_B_ATT1:_B_ATT1 + 1, :]                      # padded (lanes 16: zero)
    att2_wT = Bv[_B_ATT2W:_B_ATT2W + 1, :]                   # att2 weight as a row, padded
    att2_b = Bv[_B_ATT2B:_B_ATT2B + 1, 0:1]
    ln_g = Bv[_B_LNG:_B_LNG + 1, 0:D]
    ln_b = Bv[_B_LNB:_B_LNB + 1, 0:D]
    fc_w0 = Bv[_B_FCW0:_B_FCW0 + 1, 0:D]
    fc_w1 = Bv[_B_FCW1:_B_FCW1 + 1, 0:D]
    fc_b = Bv[_B_FCB:_B_FCB + 1, 0:N_CLASSES]

    # _fc1: Linear + LeakyReLU, then (x + x.mean(dim=1)) * 0.5   (B == 1)
    h0 = _leaky_relu(jnp.dot(x, fc1_w, preferred_element_type=jnp.float32) + fc1_b)
    h0 = (h0 + jnp.mean(h0, axis=0, keepdims=True)) * 0.5

    # fused W_head / W_tail projection: one [8,32]@[32,64] matmul, split by lane slice
    ht = jnp.dot(h0, whwt_w, preferred_element_type=jnp.float32) + whwt_b        # [8, 64]
    e_h = ht[:, 0:D]
    e_t = ht[:, D:2 * D]

    # attention logits over node pairs: (e_h * scale) @ e_t^T
    logit = lax.dot_general(e_h * SCALE, e_t, (((1,), (1,)), ((), ())),
                            preferred_element_type=jnp.float32)                  # [8, 8]

    # ---- one-shot top-K: rank[i,j] = #{j' ranked ahead of j in row i} ----
    # (strictly-greater, ties broken by lower column index -> matches torch.topk/lax.top_k)
    col = lax.broadcasted_iota(jnp.int32, (N, N), 1)
    rank = jnp.zeros((N, N), jnp.int32)
    for jp in range(N):        # unrolled, independent VPU compares (no serial argmax chain)
        v = logit[:, jp:jp + 1]                                                   # [8, 1]
        ahead = jnp.logical_or(v > logit, jnp.logical_and(v == logit, jp < col))
        rank = rank + ahead.astype(jnp.int32)

    is_k = [rank == k for k in range(K)]               # exact one-hot [8,8] per rank k

    # selected top-k logits -> softmax weights
    topk_vals = jnp.concatenate(
        [jnp.sum(jnp.where(m, logit, 0.0), axis=-1, keepdims=True) for m in is_k],
        axis=-1)                                                                  # [8, K]
    topk_prob = _softmax_lanes(topk_vals)                                         # [8, K]

    # neighbor gather: ONE stacked one-hot matmul [K*8,8]@[8,32]
    oh = jnp.concatenate([m.astype(jnp.float32) for m in is_k], axis=0)           # [32, 8]
    nb_rows = jnp.dot(oh, e_t, preferred_element_type=jnp.float32)                # [32, 32]
    nb = [nb_rows[k * N:(k + 1) * N, :] for k in range(K)]                        # 4 x [8,32]

    # gate = tanh(e_h + eh_r) = tanh((2-p)*e_h + p*nb): one lane-dense [8,128] EUP pass
    p_k = [topk_prob[:, k:k + 1] for k in range(K)]
    gate = jnp.tanh(jnp.concatenate(
        [(2.0 - p_k[k]) * e_h + p_k[k] * nb[k] for k in range(K)], axis=-1))      # [8, 128]

    # einsum('ijkl,ijkm->ijk', Nb_h, gate) factorizes as (sum_l Nb_h) * (sum_m gate)
    ka_w = jnp.concatenate(
        [jnp.sum(nb[k], axis=-1, keepdims=True) *
         jnp.sum(gate[:, k * D:(k + 1) * D], axis=-1, keepdims=True)
         for k in range(K)], axis=-1)                                             # [8, K]
    ka_prob = _softmax_lanes(ka_w)                                                # [8, K]

    e_Nh = ka_prob[:, 0:1] * nb[0]
    for k in range(1, K):
        e_Nh = e_Nh + ka_prob[:, k:k + 1] * nb[k]                                 # [8, 32]

    # bi-interaction aggregation: linear1 / linear2 fused into ONE MXU pass
    lhs = jnp.concatenate([e_h + e_Nh, e_h * e_Nh], axis=0)                       # [16, 32]
    act12 = _leaky_relu(jnp.dot(lhs, lin12_w,
                                preferred_element_type=jnp.float32) + lin12_b)    # [16, 64]
    emb = act12[0:N, 0:D] + act12[N:2 * N, D:2 * D]                               # [8, 32]
    # TODO(synk): message_dropout is identity in eval mode (no dropout applied here)

    # GlobalAttention readout; att2 (1 output col) done on the VPU: mul + lane reduce
    a1 = _leaky_relu(jnp.dot(emb, att1_w, preferred_element_type=jnp.float32) + att1_b)
    score = jnp.sum(a1 * att2_wT, axis=-1, keepdims=True) + att2_b                # [8, 1]
    s = score - jnp.max(score, axis=0, keepdims=True)
    es = jnp.exp(s)
    attn = es / jnp.sum(es, axis=0, keepdims=True)                                # [8, 1]
    pooled = jnp.sum(attn * emb, axis=0, keepdims=True)                           # [1, 32]

    # LayerNorm
    mu = jnp.mean(pooled, axis=-1, keepdims=True)
    var = jnp.mean((pooled - mu) ** 2, axis=-1, keepdims=True)
    normed = (pooled - mu) / jnp.sqrt(var + LN_EPS) * ln_g + ln_b                 # [1, 32]

    # classifier (2 output cols): VPU lane-reduce per class, skip the MXU tail
    l0 = jnp.sum(normed * fc_w0, axis=-1, keepdims=True)
    l1 = jnp.sum(normed * fc_w1, axis=-1, keepdims=True)
    logits = jnp.concatenate([l0, l1], axis=-1) + fc_b                            # [1, 2]

    # epilogue: fold Y_prob (softmax) and Y_hat (argmax, first-index tie-break) in-kernel
    probs = _softmax_lanes(logits)                                                # [1, 2]
    yhat = (logits[:, 1:2] > logits[:, 0:1]).astype(jnp.float32)                  # [1, 1]

    # one lane-dense (8,128) output tile: row0 = logits, row1 = probs, row2 = yhat
    out_ref[...] = jnp.zeros((N, 128), jnp.float32)
    out_ref[0:1, 0:N_CLASSES] = logits
    out_ref[1:2, 0:N_CLASSES] = probs
    out_ref[2:3, 0:1] = yhat


def init_params(key):
    C = N_CLASSES
    ks = jax.random.split(key, 12)
    s = 0.1
    p = {
        'fc1_w': jax.random.normal(ks[0], (DIM_IN, D), jnp.float32) * s,
        'fc1_b': jax.random.normal(ks[1], (1, D), jnp.float32) * s,
        'wh_w': jax.random.normal(ks[2], (D, D), jnp.float32) * s,
        'wh_b': jnp.zeros((1, D), jnp.float32),
        'wt_w': jax.random.normal(ks[3], (D, D), jnp.float32) * s,
        'wt_b': jnp.zeros((1, D), jnp.float32),
        'lin1_w': jax.random.normal(ks[4], (D, D), jnp.float32) * s,
        'lin1_b': jax.random.normal(ks[5], (1, D), jnp.float32) * s,
        'lin2_w': jax.random.normal(ks[6], (D, D), jnp.float32) * s,
        'lin2_b': jax.random.normal(ks[7], (1, D), jnp.float32) * s,
        'att1_w': jax.random.normal(ks[8], (D, H), jnp.float32) * s,
        'att1_b': jnp.zeros((1, H), jnp.float32),
        'att2_w': jax.random.normal(ks[9], (H, 1), jnp.float32) * s,
        'att2_b': jnp.zeros((1, 1), jnp.float32),
        'ln_g': jnp.ones((1, D), jnp.float32),
        'ln_b': jnp.zeros((1, D), jnp.float32),
        'fc_w': jax.random.normal(ks[10], (D, C), jnp.float32) * s,
        'fc_b': jax.random.normal(ks[11], (1, C), jnp.float32) * s,
    }
    return p


def pack_params(p):
    """Pack all 19 parameter tensors into ONE sublane-aligned slab. Called once at init."""
    S = jnp.zeros((_SLAB_ROWS, _SLAB_COLS), jnp.float32)
    S = S.at[_ROW_WHWT:_ROW_WHWT + D, 0:D].set(p['wh_w'])
    S = S.at[_ROW_WHWT:_ROW_WHWT + D, D:2 * D].set(p['wt_w'])
    S = S.at[_ROW_LIN12:_ROW_LIN12 + D, 0:D].set(p['lin1_w'])
    S = S.at[_ROW_LIN12:_ROW_LIN12 + D, D:2 * D].set(p['lin2_w'])
    S = S.at[_ROW_ATT1:_ROW_ATT1 + D, 0:H].set(p['att1_w'])        # padded to 64 out lanes
    S = S.at[_ROW_FC1:_ROW_FC1 + DIM_IN, 0:D].set(p['fc1_w'])
    b = _ROW_BIAS
    S = S.at[b + _B_FC1, 0:D].set(p['fc1_b'][0])
    S = S.at[b + _B_WHWT, 0:D].set(p['wh_b'][0])
    S = S.at[b + _B_WHWT, D:2 * D].set(p['wt_b'][0])
    S = S.at[b + _B_LIN12, 0:D].set(p['lin1_b'][0])
    S = S.at[b + _B_LIN12, D:2 * D].set(p['lin2_b'][0])
    S = S.at[b + _B_ATT1, 0:H].set(p['att1_b'][0])
    S = S.at[b + _B_ATT2W, 0:H].set(p['att2_w'][:, 0])             # transposed row, padded
    S = S.at[b + _B_ATT2B, 0].set(p['att2_b'][0, 0])
    S = S.at[b + _B_LNG, 0:D].set(p['ln_g'][0])
    S = S.at[b + _B_LNB, 0:D].set(p['ln_b'][0])
    S = S.at[b + _B_FCW0, 0:D].set(p['fc_w'][:, 0])
    S = S.at[b + _B_FCW1, 0:D].set(p['fc_w'][:, 1])
    S = S.at[b + _B_FCB, 0:N_CLASSES].set(p['fc_b'][0])
    return S


@jax.jit
def wikg_forward(data, ct_data, param_slab):
    # The CT branch of the torch forward is dead code (its result is never used) — dropped.
    del ct_data
    x = jnp.squeeze(data, axis=0)                        # [N, DIM_IN]  (B == 1)

    out = pl.pallas_call(
        wikg_kernel,
        out_shape=jax.ShapeDtypeStruct((N_NODES, 128), jnp.float32),
        in_specs=[pl.BlockSpec(memory_space=pltpu.MemorySpace.VMEM)] * 2,
        out_specs=pl.BlockSpec(memory_space=pltpu.MemorySpace.VMEM),
    )(x, param_slab)

    logits = out[0:1, 0:N_CLASSES]
    y_prob = out[1:2, 0:N_CLASSES]
    y_hat = out[2:3, 0:1].astype(jnp.int32)              # torch.topk(logits, 1, dim=1)[1]
    return logits, y_prob, y_hat


def wikg_reference(data, params):
    # Pure-JAX replica of the torch forward (sanity check of the kernel).
    p = params
    x = jnp.squeeze(data, axis=0)
    h0 = _leaky_relu(x @ p['fc1_w'] + p['fc1_b'])
    h0 = (h0 + h0.mean(axis=0, keepdims=True)) * 0.5
    e_h = h0 @ p['wh_w'] + p['wh_b']
    e_t = h0 @ p['wt_w'] + p['wt_b']
    logit = (e_h * SCALE) @ e_t.T
    vals, idx = lax.top_k(logit, TOPK)
    nb = e_t[idx]                                        # [N, K, D]
    tp = jax.nn.softmax(vals, axis=-1)
    eh_r = tp[..., None] * nb + (1.0 - tp)[..., None] * e_h[:, None, :]
    gate = jnp.tanh(e_h[:, None, :] + eh_r)
    ka_w = nb.sum(axis=-1) * gate.sum(axis=-1)           # einsum('ijkl,ijkm->ijk') factorized
    ka_p = jax.nn.softmax(ka_w, axis=-1)
    e_nh = (ka_p[..., None] * nb).sum(axis=1)
    sum_emb = _leaky_relu((e_h + e_nh) @ p['lin1_w'] + p['lin1_b'])
    bi_emb = _leaky_relu((e_h * e_nh) @ p['lin2_w'] + p['lin2_b'])
    emb = sum_emb + bi_emb
    score = _leaky_relu(emb @ p['att1_w'] + p['att1_b']) @ p['att2_w'] + p['att2_b']
    a = jax.nn.softmax(score, axis=0)
    pooled = (a * emb).sum(axis=0, keepdims=True)
    mu = pooled.mean(axis=-1, keepdims=True)
    var = ((pooled - mu) ** 2).mean(axis=-1, keepdims=True)
    normed = (pooled - mu) / jnp.sqrt(var + LN_EPS) * p['ln_g'] + p['ln_b']
    return normed @ p['fc_w'] + p['fc_b']


if __name__ == "__main__":
    key = jax.random.PRNGKey(0)
    k_data, k_ct, k_params = jax.random.split(key, 3)

    data = jax.random.normal(k_data, (1, N_NODES, DIM_IN), jnp.float32)
    ct_data = jax.random.normal(k_ct, (1, CT_LEN, DIM_IN), jnp.float32)
    params = init_params(k_params)

    # Pack the parameter slab ONCE, outside the jitted per-call path.
    param_slab = jax.block_until_ready(pack_params(params))

    logits, y_prob, y_hat = jax.block_until_ready(wikg_forward(data, ct_data, param_slab))

    ref_logits = wikg_reference(data, params)
    # Tolerance covers differing f32-matmul precision paths (Mosaic MXU vs XLA default
    # bf16-pass dots); slab-layout / packing bugs manifest as O(1) errors, so this still
    # catches them.
    assert jnp.allclose(logits, ref_logits, atol=1e-2, rtol=1e-2), (logits, ref_logits)
    assert jnp.allclose(y_prob, jax.nn.softmax(ref_logits, axis=1), atol=1e-2, rtol=1e-2)
    assert int(y_hat[0, 0]) == int(jnp.argmax(logits, axis=1)[0])
    assert logits.shape == (1, N_CLASSES)
    assert y_prob.shape == (1, N_CLASSES)
    assert y_hat.shape == (1, 1)

    print("KERNEL_OK")
</pallas_src>

<mosaic_0001>
module attributes {stable_mosaic.version = 11 : i64} {
  func.func @wikg_kernel(%arg0: memref<8x16xf32, #tpu.memory_space<vmem>>, %arg1: memref<128x64xf32, #tpu.memory_space<vmem>>, %arg2: memref<8x128xf32, #tpu.memory_space<vmem>>) attributes {dimension_semantics = [], scalar_prefetch = 0 : i64, scratch_operands = 0 : i64, tpu.core_type = #tpu.core_type<tc>} {
    %c0 = arith.constant 0 : index
    %c0_0 = arith.constant 0 : index
    %0 = vector.load %arg0[%c0, %c0_0] : memref<8x16xf32, #tpu.memory_space<vmem>>, vector<8x16xf32>
    %c0_1 = arith.constant 0 : index
    %c0_2 = arith.constant 0 : index
    %1 = vector.load %arg1[%c0_1, %c0_2] : memref<128x64xf32, #tpu.memory_space<vmem>>, vector<32x64xf32>
    %c32 = arith.constant 32 : index
    %c0_3 = arith.constant 0 : index
    %2 = vector.load %arg1[%c32, %c0_3] : memref<128x64xf32, #tpu.memory_space<vmem>>, vector<32x64xf32>
    %c64 = arith.constant 64 : index
    %c0_4 = arith.constant 0 : index
    %3 = vector.load %arg1[%c64, %c0_4] : memref<128x64xf32, #tpu.memory_space<vmem>>, vector<32x64xf32>
    %c96 = arith.constant 96 : index
    %c0_5 = arith.constant 0 : index
    %4 = vector.load %arg1[%c96, %c0_5] : memref<128x64xf32, #tpu.memory_space<vmem>>, vector<16x32xf32>
    %c112 = arith.constant 112 : index
    %c0_6 = arith.constant 0 : index
    %5 = vector.load %arg1[%c112, %c0_6] : memref<128x64xf32, #tpu.memory_space<vmem>>, vector<16x64xf32>
    %6 = vector.extract_strided_slice %5 {offsets = [0, 0], sizes = [1, 32], strides = [1, 1]} : vector<16x64xf32> to vector<1x32xf32>
    %7 = vector.extract_strided_slice %5 {offsets = [1, 0], sizes = [1, 64], strides = [1, 1]} : vector<16x64xf32> to vector<1x64xf32>
    %8 = vector.extract_strided_slice %5 {offsets = [2, 0], sizes = [1, 64], strides = [1, 1]} : vector<16x64xf32> to vector<1x64xf32>
    %9 = vector.extract_strided_slice %5 {offsets = [3, 0], sizes = [1, 64], strides = [1, 1]} : vector<16x64xf32> to vector<1x64xf32>
    %10 = vector.extract_strided_slice %5 {offsets = [4, 0], sizes = [1, 64], strides = [1, 1]} : vector<16x64xf32> to vector<1x64xf32>
    %11 = vector.extract_strided_slice %5 {offsets = [5, 0], sizes = [1, 1], strides = [1, 1]} : vector<16x64xf32> to vector<1x1xf32>
    %12 = vector.extract_strided_slice %5 {offsets = [6, 0], sizes = [1, 32], strides = [1, 1]} : vector<16x64xf32> to vector<1x32xf32>
    %13 = vector.extract_strided_slice %5 {offsets = [7, 0], sizes = [1, 32], strides = [1, 1]} : vector<16x64xf32> to vector<1x32xf32>
    %14 = vector.extract_strided_slice %5 {offsets = [8, 0], sizes = [1, 32], strides = [1, 1]} : vector<16x64xf32> to vector<1x32xf32>
    %15 = vector.extract_strided_slice %5 {offsets = [9, 0], sizes = [1, 32], strides = [1, 1]} : vector<16x64xf32> to vector<1x32xf32>
    %16 = vector.extract_strided_slice %5 {offsets = [10, 0], sizes = [1, 2], strides = [1, 1]} : vector<16x64xf32> to vector<1x2xf32>
    %cst = arith.constant dense<0.000000e+00> : vector<8x32xf32>
    %17 = tpu.matmul %0, %4, %cst {dimension_numbers = #tpu.dot_dimension_numbers<[1], [0], [0], [1], [0, 0, 1, 1], [], []>} : vector<8x16xf32>, vector<16x32xf32>, vector<8x32xf32> -> vector<8x32xf32>
    %18 = vector.broadcast %6 : vector<1x32xf32> to vector<8x32xf32>
    %19 = arith.addf %17, %18 : vector<8x32xf32>
    %cst_7 = arith.constant 0.000000e+00 : f32
    %20 = vector.broadcast %cst_7 : f32 to vector<8x32xf32>
    %21 = arith.cmpf oge, %19, %20 : vector<8x32xf32>
    %cst_8 = arith.constant 0.00999999977 : f32
    %22 = vector.broadcast %cst_8 : f32 to vector<8x32xf32>
    %23 = arith.mulf %22, %19 : vector<8x32xf32>
    %24 = arith.select %21, %19, %23 : vector<8x32xi1>, vector<8x32xf32>
    %cst_9 = arith.constant dense<0.000000e+00> : vector<32xf32>
    %25 = vector.multi_reduction <add>, %24, %cst_9 [0] : vector<8x32xf32> to vector<32xf32>
    %26 = vector.shape_cast %25 : vector<32xf32> to vector<1x32xf32>
    %cst_10 = arith.constant 8.000000e+00 : f32
    %27 = vector.broadcast %cst_10 : f32 to vector<1x32xf32>
    %28 = arith.divf %26, %27 : vector<1x32xf32>
    %29 = vector.broadcast %28 : vector<1x32xf32> to vector<8x32xf32>
    %30 = arith.addf %24, %29 : vector<8x32xf32>
    %cst_11 = arith.constant 5.000000e-01 : f32
    %31 = vector.broadcast %cst_11 : f32 to vector<8x32xf32>
    %32 = arith.mulf %30, %31 : vector<8x32xf32>
    %cst_12 = arith.constant dense<0.000000e+00> : vector<8x64xf32>
    %33 = tpu.matmul %32, %1, %cst_12 {dimension_numbers = #tpu.dot_dimension_numbers<[1], [0], [0], [1], [0, 0, 1, 1], [], []>} : vector<8x32xf32>, vector<32x64xf32>, vector<8x64xf32> -> vector<8x64xf32>
    %34 = vector.broadcast %7 : vector<1x64xf32> to vector<8x64xf32>
    %35 = arith.addf %33, %34 : vector<8x64xf32>
    %36 = vector.extract_strided_slice %35 {offsets = [0, 0], sizes = [8, 32], strides = [1, 1]} : vector<8x64xf32> to vector<8x32xf32>
    %37 = vector.extract_strided_slice %35 {offsets = [0, 32], sizes = [8, 32], strides = [1, 1]} : vector<8x64xf32> to vector<8x32xf32>
    %cst_13 = arith.constant 0.176776692 : f32
    %38 = vector.broadcast %cst_13 : f32 to vector<8x32xf32>
    %39 = arith.mulf %36, %38 : vector<8x32xf32>
    %cst_14 = arith.constant dense<0.000000e+00> : vector<8x8xf32>
    %40 = tpu.matmul %39, %37, %cst_14 {dimension_numbers = #tpu.dot_dimension_numbers<[1], [1], [0], [0], [0, 0, 1, 0], [], []>} : vector<8x32xf32>, vector<8x32xf32>, vector<8x8xf32> -> vector<8x8xf32>
    %41 = tpu.iota {dimensions = array<i32: 1>} : vector<8x8xi32>
    %c0_i32 = arith.constant 0 : i32
    %42 = vector.broadcast %c0_i32 : i32 to vector<8x8xi32>
    %43 = vector.extract_strided_slice %40 {offsets = [0, 0], sizes = [8, 1], strides = [1, 1]} : vector<8x8xf32> to vector<8x1xf32>
    %44 = vector.broadcast %43 : vector<8x1xf32> to vector<8x8xf32>
    %45 = arith.cmpf ogt, %44, %40 : vector<8x8xf32>
    %46 = vector.broadcast %43 : vector<8x1xf32> to vector<8x8xf32>
    %47 = arith.cmpf oeq, %46, %40 : vector<8x8xf32>
    %c0_i32_15 = arith.constant 0 : i32
    %48 = vector.broadcast %c0_i32_15 : i32 to vector<8x8xi32>
    %49 = arith.cmpi sgt, %41, %48 : vector<8x8xi32>
    %50 = arith.andi %47, %49 : vector<8x8xi1>
    %51 = arith.ori %45, %50 : vector<8x8xi1>
    %52 = arith.extui %51 : vector<8x8xi1> to vector<8x8xi32>
    %53 = arith.addi %42, %52 : vector<8x8xi32>
    %54 = vector.extract_strided_slice %40 {offsets = [0, 1], sizes = [8, 1], strides = [1, 1]} : vector<8x8xf32> to vector<8x1xf32>
    %55 = vector.broadcast %54 : vector<8x1xf32> to vector<8x8xf32>
    %56 = arith.cmpf ogt, %55, %40 : vector<8x8xf32>
    %57 = vector.broadcast %54 : vector<8x1xf32> to vector<8x8xf32>
    %58 = arith.cmpf oeq, %57, %40 : vector<8x8xf32>
    %c1_i32 = arith.constant 1 : i32
    %59 = vector.broadcast %c1_i32 : i32 to vector<8x8xi32>
    %60 = arith.cmpi sgt, %41, %59 : vector<8x8xi32>
    %61 = arith.andi %58, %60 : vector<8x8xi1>
    %62 = arith.ori %56, %61 : vector<8x8xi1>
    %63 = arith.extui %62 : vector<8x8xi1> to vector<8x8xi32>
    %64 = arith.addi %53, %63 : vector<8x8xi32>
    %65 = vector.extract_strided_slice %40 {offsets = [0, 2], sizes = [8, 1], strides = [1, 1]} : vector<8x8xf32> to vector<8x1xf32>
    %66 = vector.broadcast %65 : vector<8x1xf32> to vector<8x8xf32>
    %67 = arith.cmpf ogt, %66, %40 : vector<8x8xf32>
    %68 = vector.broadcast %65 : vector<8x1xf32> to vector<8x8xf32>
    %69 = arith.cmpf oeq, %68, %40 : vector<8x8xf32>
    %c2_i32 = arith.constant 2 : i32
    %70 = vector.broadcast %c2_i32 : i32 to vector<8x8xi32>
    %71 = arith.cmpi sgt, %41, %70 : vector<8x8xi32>
    %72 = arith.andi %69, %71 : vector<8x8xi1>
    %73 = arith.ori %67, %72 : vector<8x8xi1>
    %74 = arith.extui %73 : vector<8x8xi1> to vector<8x8xi32>
    %75 = arith.addi %64, %74 : vector<8x8xi32>
    %76 = vector.extract_strided_slice %40 {offsets = [0, 3], sizes = [8, 1], strides = [1, 1]} : vector<8x8xf32> to vector<8x1xf32>
    %77 = vector.broadcast %76 : vector<8x1xf32> to vector<8x8xf32>
    %78 = arith.cmpf ogt, %77, %40 : vector<8x8xf32>
    %79 = vector.broadcast %76 : vector<8x1xf32> to vector<8x8xf32>
    %80 = arith.cmpf oeq, %79, %40 : vector<8x8xf32>
    %c3_i32 = arith.constant 3 : i32
    %81 = vector.broadcast %c3_i32 : i32 to vector<8x8xi32>
    %82 = arith.cmpi sgt, %41, %81 : vector<8x8xi32>
    %83 = arith.andi %80, %82 : vector<8x8xi1>
    %84 = arith.ori %78, %83 : vector<8x8xi1>
    %85 = arith.extui %84 : vector<8x8xi1> to vector<8x8xi32>
    %86 = arith.addi %75, %85 : vector<8x8xi32>
    %87 = vector.extract_strided_slice %40 {offsets = [0, 4], sizes = [8, 1], strides = [1, 1]} : vector<8x8xf32> to vector<8x1xf32>
    %88 = vector.broadcast %87 : vector<8x1xf32> to vector<8x8xf32>
    %89 = arith.cmpf ogt, %88, %40 : vector<8x8xf32>
    %90 = vector.broadcast %87 : vector<8x1xf32> to vector<8x8xf32>
    %91 = arith.cmpf oeq, %90, %40 : vector<8x8xf32>
    %c4_i32 = arith.constant 4 : i32
    %92 = vector.broadcast %c4_i32 : i32 to vector<8x8xi32>
    %93 = arith.cmpi sgt, %41, %92 : vector<8x8xi32>
    %94 = arith.andi %91, %93 : vector<8x8xi1>
    %95 = arith.ori %89, %94 : vector<8x8xi1>
    %96 = arith.extui %95 : vector<8x8xi1> to vector<8x8xi32>
    %97 = arith.addi %86, %96 : vector<8x8xi32>
    %98 = vector.extract_strided_slice %40 {offsets = [0, 5], sizes = [8, 1], strides = [1, 1]} : vector<8x8xf32> to vector<8x1xf32>
    %99 = vector.broadcast %98 : vector<8x1xf32> to vector<8x8xf32>
    %100 = arith.cmpf ogt, %99, %40 : vector<8x8xf32>
    %101 = vector.broadcast %98 : vector<8x1xf32> to vector<8x8xf32>
    %102 = arith.cmpf oeq, %101, %40 : vector<8x8xf32>
    %c5_i32 = arith.constant 5 : i32
    %103 = vector.broadcast %c5_i32 : i32 to vector<8x8xi32>
    %104 = arith.cmpi sgt, %41, %103 : vector<8x8xi32>
    %105 = arith.andi %102, %104 : vector<8x8xi1>
    %106 = arith.ori %100, %105 : vector<8x8xi1>
    %107 = arith.extui %106 : vector<8x8xi1> to vector<8x8xi32>
    %108 = arith.addi %97, %107 : vector<8x8xi32>
    %109 = vector.extract_strided_slice %40 {offsets = [0, 6], sizes = [8, 1], strides = [1, 1]} : vector<8x8xf32> to vector<8x1xf32>
    %110 = vector.broadcast %109 : vector<8x1xf32> to vector<8x8xf32>
    %111 = arith.cmpf ogt, %110, %40 : vector<8x8xf32>
    %112 = vector.broadcast %109 : vector<8x1xf32> to vector<8x8xf32>
    %113 = arith.cmpf oeq, %112, %40 : vector<8x8xf32>
    %c6_i32 = arith.constant 6 : i32
    %114 = vector.broadcast %c6_i32 : i32 to vector<8x8xi32>
    %115 = arith.cmpi sgt, %41, %114 : vector<8x8xi32>
    %116 = arith.andi %113, %115 : vector<8x8xi1>
    %117 = arith.ori %111, %116 : vector<8x8xi1>
    %118 = arith.extui %117 : vector<8x8xi1> to vector<8x8xi32>
    %119 = arith.addi %108, %118 : vector<8x8xi32>
    %120 = vector.extract_strided_slice %40 {offsets = [0, 7], sizes = [8, 1], strides = [1, 1]} : vector<8x8xf32> to vector<8x1xf32>
    %121 = vector.broadcast %120 : vector<8x1xf32> to vector<8x8xf32>
    %122 = arith.cmpf ogt, %121, %40 : vector<8x8xf32>
    %123 = vector.broadcast %120 : vector<8x1xf32> to vector<8x8xf32>
    %124 = arith.cmpf oeq, %123, %40 : vector<8x8xf32>
    %c7_i32 = arith.constant 7 : i32
    %125 = vector.broadcast %c7_i32 : i32 to vector<8x8xi32>
    %126 = arith.cmpi sgt, %41, %125 : vector<8x8xi32>
    %127 = arith.andi %124, %126 : vector<8x8xi1>
    %128 = arith.ori %122, %127 : vector<8x8xi1>
    %129 = arith.extui %128 : vector<8x8xi1> to vector<8x8xi32>
    %130 = arith.addi %119, %129 : vector<8x8xi32>
    %c0_i32_16 = arith.constant 0 : i32
    %131 = vector.broadcast %c0_i32_16 : i32 to vector<8x8xi32>
    %132 = arith.cmpi eq, %130, %131 : vector<8x8xi32>
    %c1_i32_17 = arith.constant 1 : i32
    %133 = vector.broadcast %c1_i32_17 : i32 to vector<8x8xi32>
    %134 = arith.cmpi eq, %130, %133 : vector<8x8xi32>
    %c2_i32_18 = arith.constant 2 : i32
    %135 = vector.broadcast %c2_i32_18 : i32 to vector<8x8xi32>
    %136 = arith.cmpi eq, %130, %135 : vector<8x8xi32>
    %c3_i32_19 = arith.constant 3 : i32
    %137 = vector.broadcast %c3_i32_19 : i32 to vector<8x8xi32>
    %138 = arith.cmpi eq, %130, %137 : vector<8x8xi32>
    %cst_20 = arith.constant 0.000000e+00 : f32
    %139 = vector.broadcast %cst_20 : f32 to vector<8x8xf32>
    %140 = arith.select %132, %40, %139 : vector<8x8xi1>, vector<8x8xf32>
    %cst_21 = arith.constant dense<0.000000e+00> : vector<8xf32>
    %141 = vector.multi_reduction <add>, %140, %cst_21 [1] : vector<8x8xf32> to vector<8xf32>
    %142 = vector.shape_cast %141 : vector<8xf32> to vector<8x1xf32>
    %cst_22 = arith.constant 0.000000e+00 : f32
    %143 = vector.broadcast %cst_22 : f32 to vector<8x8xf32>
    %144 = arith.select %134, %40, %143 : vector<8x8xi1>, vector<8x8xf32>
    %cst_23 = arith.constant dense<0.000000e+00> : vector<8xf32>
    %145 = vector.multi_reduction <add>, %144, %cst_23 [1] : vector<8x8xf32> to vector<8xf32>
    %146 = vector.shape_cast %145 : vector<8xf32> to vector<8x1xf32>
    %cst_24 = arith.constant 0.000000e+00 : f32
    %147 = vector.broadcast %cst_24 : f32 to vector<8x8xf32>
    %148 = arith.select %136, %40, %147 : vector<8x8xi1>, vector<8x8xf32>
    %cst_25 = arith.constant dense<0.000000e+00> : vector<8xf32>
    %149 = vector.multi_reduction <add>, %148, %cst_25 [1] : vector<8x8xf32> to vector<8xf32>
    %150 = vector.shape_cast %149 : vector<8xf32> to vector<8x1xf32>
    %cst_26 = arith.constant 0.000000e+00 : f32
    %151 = vector.broadcast %cst_26 : f32 to vector<8x8xf32>
    %152 = arith.select %138, %40, %151 : vector<8x8xi1>, vector<8x8xf32>
    %cst_27 = arith.constant dense<0.000000e+00> : vector<8xf32>
    %153 = vector.multi_reduction <add>, %152, %cst_27 [1] : vector<8x8xf32> to vector<8xf32>
    %154 = vector.shape_cast %153 : vector<8xf32> to vector<8x1xf32>
    %155 = tpu.concatenate %142, %146, %150, %154 in 1 : vector<8x1xf32>, vector<8x1xf32>, vector<8x1xf32>, vector<8x1xf32> -> vector<8x4xf32>
    %cst_28 = arith.constant dense<0xFF800000> : vector<8xf32>
    %156 = vector.multi_reduction <maximumf>, %155, %cst_28 [1] : vector<8x4xf32> to vector<8xf32>
    %157 = vector.shape_cast %156 : vector<8xf32> to vector<8x1xf32>
    %158 = vector.broadcast %157 : vector<8x1xf32> to vector<8x4xf32>
    %159 = arith.subf %155, %158 : vector<8x4xf32>
    %160 = math.exp %159 : vector<8x4xf32>
    %cst_29 = arith.constant dense<0.000000e+00> : vector<8xf32>
    %161 = vector.multi_reduction <add>, %160, %cst_29 [1] : vector<8x4xf32> to vector<8xf32>
    %162 = vector.shape_cast %161 : vector<8xf32> to vector<8x1xf32>
    %163 = vector.broadcast %162 : vector<8x1xf32> to vector<8x4xf32>
    %164 = arith.divf %160, %163 : vector<8x4xf32>
    %165 = arith.extui %132 : vector<8x8xi1> to vector<8x8xi32>
    %166 = arith.sitofp %165 : vector<8x8xi32> to vector<8x8xf32>
    %167 = arith.extui %134 : vector<8x8xi1> to vector<8x8xi32>
    %168 = arith.sitofp %167 : vector<8x8xi32> to vector<8x8xf32>
    %169 = arith.extui %136 : vector<8x8xi1> to vector<8x8xi32>
    %170 = arith.sitofp %169 : vector<8x8xi32> to vector<8x8xf32>
    %171 = arith.extui %138 : vector<8x8xi1> to vector<8x8xi32>
    %172 = arith.sitofp %171 : vector<8x8xi32> to vector<8x8xf32>
    %173 = tpu.concatenate %166, %168, %170, %172 in 0 : vector<8x8xf32>, vector<8x8xf32>, vector<8x8xf32>, vector<8x8xf32> -> vector<32x8xf32>
    %cst_30 = arith.constant dense<0.000000e+00> : vector<32x32xf32>
    %174 = tpu.matmul %173, %37, %cst_30 {dimension_numbers = #tpu.dot_dimension_numbers<[1], [0], [0], [1], [0, 0, 1, 1], [], []>} : vector<32x8xf32>, vector<8x32xf32>, vector<32x32xf32> -> vector<32x32xf32>
    %175 = vector.extract_strided_slice %174 {offsets = [0, 0], sizes = [8, 32], strides = [1, 1]} : vector<32x32xf32> to vector<8x32xf32>
    %176 = vector.extract_strided_slice %174 {offsets = [8, 0], sizes = [8, 32], strides = [1, 1]} : vector<32x32xf32> to vector<8x32xf32>
    %177 = vector.extract_strided_slice %174 {offsets = [16, 0], sizes = [8, 32], strides = [1, 1]} : vector<32x32xf32> to vector<8x32xf32>
    %178 = vector.extract_strided_slice %174 {offsets = [24, 0], sizes = [8, 32], strides = [1, 1]} : vector<32x32xf32> to vector<8x32xf32>
    %179 = vector.extract_strided_slice %164 {offsets = [0, 0], sizes = [8, 1], strides = [1, 1]} : vector<8x4xf32> to vector<8x1xf32>
    %180 = vector.extract_strided_slice %164 {offsets = [0, 1], sizes = [8, 1], strides = [1, 1]} : vector<8x4xf32> to vector<8x1xf32>
    %181 = vector.extract_strided_slice %164 {offsets = [0, 2], sizes = [8, 1], strides = [1, 1]} : vector<8x4xf32> to vector<8x1xf32>
    %182 = vector.extract_strided_slice %164 {offsets = [0, 3], sizes = [8, 1], strides = [1, 1]} : vector<8x4xf32> to vector<8x1xf32>
    %cst_31 = arith.constant 2.000000e+00 : f32
    %183 = vector.broadcast %cst_31 : f32 to vector<8x1xf32>
    %184 = arith.subf %183, %179 : vector<8x1xf32>
    %185 = vector.broadcast %184 : vector<8x1xf32> to vector<8x32xf32>
    %186 = arith.mulf %185, %36 : vector<8x32xf32>
    %187 = vector.broadcast %179 : vector<8x1xf32> to vector<8x32xf32>
    %188 = arith.mulf %187, %175 : vector<8x32xf32>
    %189 = arith.addf %186, %188 : vector<8x32xf32>
    %cst_32 = arith.constant 2.000000e+00 : f32
    %190 = vector.broadcast %cst_32 : f32 to vector<8x1xf32>
    %191 = arith.subf %190, %180 : vector<8x1xf32>
    %192 = vector.broadcast %191 : vector<8x1xf32> to vector<8x32xf32>
    %193 = arith.mulf %192, %36 : vector<8x32xf32>
    %194 = vector.broadcast %180 : vector<8x1xf32> to vector<8x32xf32>
    %195 = arith.mulf %194, %176 : vector<8x32xf32>
    %196 = arith.addf %193, %195 : vector<8x32xf32>
    %cst_33 = arith.constant 2.000000e+00 : f32
    %197 = vector.broadcast %cst_33 : f32 to vector<8x1xf32>
    %198 = arith.subf %197, %181 : vector<8x1xf32>
    %199 = vector.broadcast %198 : vector<8x1xf32> to vector<8x32xf32>
    %200 = arith.mulf %199, %36 : vector<8x32xf32>
    %201 = vector.broadcast %181 : vector<8x1xf32> to vector<8x32xf32>
    %202 = arith.mulf %201, %177 : vector<8x32xf32>
    %203 = arith.addf %200, %202 : vector<8x32xf32>
    %cst_34 = arith.constant 2.000000e+00 : f32
    %204 = vector.broadcast %cst_34 : f32 to vector<8x1xf32>
    %205 = arith.subf %204, %182 : vector<8x1xf32>
    %206 = vector.broadcast %205 : vector<8x1xf32> to vector<8x32xf32>
    %207 = arith.mulf %206, %36 : vector<8x32xf32>
    %208 = vector.broadcast %182 : vector<8x1xf32> to vector<8x32xf32>
    %209 = arith.mulf %208, %178 : vector<8x32xf32>
    %210 = arith.addf %207, %209 : vector<8x32xf32>
    %211 = tpu.concatenate %189, %196, %203, %210 in 1 : vector<8x32xf32>, vector<8x32xf32>, vector<8x32xf32>, vector<8x32xf32> -> vector<8x128xf32>
    %212 = math.tanh %211 : vector<8x128xf32>
    %cst_35 = arith.constant dense<0.000000e+00> : vector<8xf32>
    %213 = vector.multi_reduction <add>, %175, %cst_35 [1] : vector<8x32xf32> to vector<8xf32>
    %214 = vector.shape_cast %213 : vector<8xf32> to vector<8x1xf32>
    %215 = vector.extract_strided_slice %212 {offsets = [0, 0], sizes = [8, 32], strides = [1, 1]} : vector<8x128xf32> to vector<8x32xf32>
    %cst_36 = arith.constant dense<0.000000e+00> : vector<8xf32>
    %216 = vector.multi_reduction <add>, %215, %cst_36 [1] : vector<8x32xf32> to vector<8xf32>
    %217 = vector.shape_cast %216 : vector<8xf32> to vector<8x1xf32>
    %218 = arith.mulf %214, %217 : vector<8x1xf32>
    %cst_37 = arith.constant dense<0.000000e+00> : vector<8xf32>
    %219 = vector.multi_reduction <add>, %176, %cst_37 [1] : vector<8x32xf32> to vector<8xf32>
    %220 = vector.shape_cast %219 : vector<8xf32> to vector<8x1xf32>
    %221 = vector.extract_strided_slice %212 {offsets = [0, 32], sizes = [8, 32], strides = [1, 1]} : vector<8x128xf32> to vector<8x32xf32>
    %cst_38 = arith.constant dense<0.000000e+00> : vector<8xf32>
    %222 = vector.multi_reduction <add>, %221, %cst_38 [1] : vector<8x32xf32> to vector<8xf32>
    %223 = vector.shape_cast %222 : vector<8xf32> to vector<8x1xf32>
    %224 = arith.mulf %220, %223 : vector<8x1xf32>
    %cst_39 = arith.constant dense<0.000000e+00> : vector<8xf32>
    %225 = vector.multi_reduction <add>, %177, %cst_39 [1] : vector<8x32xf32> to vector<8xf32>
    %226 = vector.shape_cast %225 : vector<8xf32> to vector<8x1xf32>
    %227 = vector.extract_strided_slice %212 {offsets = [0, 64], sizes = [8, 32], strides = [1, 1]} : vector<8x128xf32> to vector<8x32xf32>
    %cst_40 = arith.constant dense<0.000000e+00> : vector<8xf32>
    %228 = vector.multi_reduction <add>, %227, %cst_40 [1] : vector<8x32xf32> to vector<8xf32>
    %229 = vector.shape_cast %228 : vector<8xf32> to vector<8x1xf32>
    %230 = arith.mulf %226, %229 : vector<8x1xf32>
    %cst_41 = arith.constant dense<0.000000e+00> : vector<8xf32>
    %231 = vector.multi_reduction <add>, %178, %cst_41 [1] : vector<8x32xf32> to vector<8xf32>
    %232 = vector.shape_cast %231 : vector<8xf32> to vector<8x1xf32>
    %233 = vector.extract_strided_slice %212 {offsets = [0, 96], sizes = [8, 32], strides = [1, 1]} : vector<8x128xf32> to vector<8x32xf32>
    %cst_42 = arith.constant dense<0.000000e+00> : vector<8xf32>
    %234 = vector.multi_reduction <add>, %233, %cst_42 [1] : vector<8x32xf32> to vector<8xf32>
    %235 = vector.shape_cast %234 : vector<8xf32> to vector<8x1xf32>
    %236 = arith.mulf %232, %235 : vector<8x1xf32>
    %237 = tpu.concatenate %218, %224, %230, %236 in 1 : vector<8x1xf32>, vector<8x1xf32>, vector<8x1xf32>, vector<8x1xf32> -> vector<8x4xf32>
    %cst_43 = arith.constant dense<0xFF800000> : vector<8xf32>
    %238 = vector.multi_reduction <maximumf>, %237, %cst_43 [1] : vector<8x4xf32> to vector<8xf32>
    %239 = vector.shape_cast %238 : vector<8xf32> to vector<8x1xf32>
    %240 = vector.broadcast %239 : vector<8x1xf32> to vector<8x4xf32>
    %241 = arith.subf %237, %240 : vector<8x4xf32>
    %242 = math.exp %241 : vector<8x4xf32>
    %cst_44 = arith.constant dense<0.000000e+00> : vector<8xf32>
    %243 = vector.multi_reduction <add>, %242, %cst_44 [1] : vector<8x4xf32> to vector<8xf32>
    %244 = vector.shape_cast %243 : vector<8xf32> to vector<8x1xf32>
    %245 = vector.broadcast %244 : vector<8x1xf32> to vector<8x4xf32>
    %246 = arith.divf %242, %245 : vector<8x4xf32>
    %247 = vector.extract_strided_slice %246 {offsets = [0, 0], sizes = [8, 1], strides = [1, 1]} : vector<8x4xf32> to vector<8x1xf32>
    %248 = vector.broadcast %247 : vector<8x1xf32> to vector<8x32xf32>
    %249 = arith.mulf %248, %175 : vector<8x32xf32>
    %250 = vector.extract_strided_slice %246 {offsets = [0, 1], sizes = [8, 1], strides = [1, 1]} : vector<8x4xf32> to vector<8x1xf32>
    %251 = vector.broadcast %250 : vector<8x1xf32> to vector<8x32xf32>
    %252 = arith.mulf %251, %176 : vector<8x32xf32>
    %253 = arith.addf %249, %252 : vector<8x32xf32>
    %254 = vector.extract_strided_slice %246 {offsets = [0, 2], sizes = [8, 1], strides = [1, 1]} : vector<8x4xf32> to vector<8x1xf32>
    %255 = vector.broadcast %254 : vector<8x1xf32> to vector<8x32xf32>
    %256 = arith.mulf %255, %177 : vector<8x32xf32>
    %257 = arith.addf %253, %256 : vector<8x32xf32>
    %258 = vector.extract_strided_slice %246 {offsets = [0, 3], sizes = [8, 1], strides = [1, 1]} : vector<8x4xf32> to vector<8x1xf32>
    %259 = vector.broadcast %258 : vector<8x1xf32> to vector<8x32xf32>
    %260 = arith.mulf %259, %178 : vector<8x32xf32>
    %261 = arith.addf %257, %260 : vector<8x32xf32>
    %262 = arith.addf %36, %261 : vector<8x32xf32>
    %263 = arith.mulf %36, %261 : vector<8x32xf32>
    %264 = tpu.concatenate %262, %263 in 0 : vector<8x32xf32>, vector<8x32xf32> -> vector<16x32xf32>
    %cst_45 = arith.constant dense<0.000000e+00> : vector<16x64xf32>
    %265 = tpu.matmul %264, %2, %cst_45 {dimension_numbers = #tpu.dot_dimension_numbers<[1], [0], [0], [1], [0, 0, 1, 1], [], []>} : vector<16x32xf32>, vector<32x64xf32>, vector<16x64xf32> -> vector<16x64xf32>
    %266 = vector.broadcast %8 : vector<1x64xf32> to vector<16x64xf32>
    %267 = arith.addf %265, %266 : vector<16x64xf32>
    %cst_46 = arith.constant 0.000000e+00 : f32
    %268 = vector.broadcast %cst_46 : f32 to vector<16x64xf32>
    %269 = arith.cmpf oge, %267, %268 : vector<16x64xf32>
    %cst_47 = arith.constant 0.00999999977 : f32
    %270 = vector.broadcast %cst_47 : f32 to vector<16x64xf32>
    %271 = arith.mulf %270, %267 : vector<16x64xf32>
    %272 = arith.select %269, %267, %271 : vector<16x64xi1>, vector<16x64xf32>
    %273 = vector.extract_strided_slice %272 {offsets = [0, 0], sizes = [8, 32], strides = [1, 1]} : vector<16x64xf32> to vector<8x32xf32>
    %274 = vector.extract_strided_slice %272 {offsets = [8, 32], sizes = [8, 32], strides = [1, 1]} : vector<16x64xf32> to vector<8x32xf32>
    %275 = arith.addf %273, %274 : vector<8x32xf32>
    %cst_48 = arith.constant dense<0.000000e+00> : vector<8x64xf32>
    %276 = tpu.matmul %275, %3, %cst_48 {dimension_numbers = #tpu.dot_dimension_numbers<[1], [0], [0], [1], [0, 0, 1, 1], [], []>} : vector<8x32xf32>, vector<32x64xf32>, vector<8x64xf32> -> vector<8x64xf32>
    %277 = vector.broadcast %9 : vector<1x64xf32> to vector<8x64xf32>
    %278 = arith.addf %276, %277 : vector<8x64xf32>
    %cst_49 = arith.constant 0.000000e+00 : f32
    %279 = vector.broadcast %cst_49 : f32 to vector<8x64xf32>
    %280 = arith.cmpf oge, %278, %279 : vector<8x64xf32>
    %cst_50 = arith.constant 0.00999999977 : f32
    %281 = vector.broadcast %cst_50 : f32 to vector<8x64xf32>
    %282 = arith.mulf %281, %278 : vector<8x64xf32>
    %283 = arith.select %280, %278, %282 : vector<8x64xi1>, vector<8x64xf32>
    %284 = vector.broadcast %10 : vector<1x64xf32> to vector<8x64xf32>
    %285 = arith.mulf %283, %284 : vector<8x64xf32>
    %cst_51 = arith.constant dense<0.000000e+00> : vector<8xf32>
    %286 = vector.multi_reduction <add>, %285, %cst_51 [1] : vector<8x64xf32> to vector<8xf32>
    %287 = vector.shape_cast %286 : vector<8xf32> to vector<8x1xf32>
    %288 = vector.broadcast %11 : vector<1x1xf32> to vector<8x1xf32>
    %289 = arith.addf %287, %288 : vector<8x1xf32>
    %cst_52 = arith.constant dense<0xFF800000> : vector<1xf32>
    %290 = vector.multi_reduction <maximumf>, %289, %cst_52 [0] : vector<8x1xf32> to vector<1xf32>
    %291 = vector.shape_cast %290 : vector<1xf32> to vector<1x1xf32>
    %292 = vector.broadcast %291 : vector<1x1xf32> to vector<8x1xf32>
    %293 = arith.subf %289, %292 : vector<8x1xf32>
    %294 = math.exp %293 : vector<8x1xf32>
    %cst_53 = arith.constant dense<0.000000e+00> : vector<1xf32>
    %295 = vector.multi_reduction <add>, %294, %cst_53 [0] : vector<8x1xf32> to vector<1xf32>
    %296 = vector.shape_cast %295 : vector<1xf32> to vector<1x1xf32>
    %297 = vector.broadcast %296 : vector<1x1xf32> to vector<8x1xf32>
    %298 = arith.divf %294, %297 : vector<8x1xf32>
    %299 = vector.broadcast %298 : vector<8x1xf32> to vector<8x32xf32>
    %300 = arith.mulf %299, %275 : vector<8x32xf32>
    %cst_54 = arith.constant dense<0.000000e+00> : vector<32xf32>
    %301 = vector.multi_reduction <add>, %300, %cst_54 [0] : vector<8x32xf32> to vector<32xf32>
    %302 = vector.shape_cast %301 : vector<32xf32> to vector<1x32xf32>
    %cst_55 = arith.constant dense<0.000000e+00> : vector<1xf32>
    %303 = vector.multi_reduction <add>, %302, %cst_55 [1] : vector<1x32xf32> to vector<1xf32>
    %304 = vector.shape_cast %303 : vector<1xf32> to vector<1x1xf32>
    %cst_56 = arith.constant 3.200000e+01 : f32
    %305 = vector.broadcast %cst_56 : f32 to vector<1x1xf32>
    %306 = arith.divf %304, %305 : vector<1x1xf32>
    %307 = vector.broadcast %306 : vector<1x1xf32> to vector<1x32xf32>
    %308 = arith.subf %302, %307 : vector<1x32xf32>
    %309 = arith.mulf %308, %308 : vector<1x32xf32>
    %cst_57 = arith.constant dense<0.000000e+00> : vector<1xf32>
    %310 = vector.multi_reduction <add>, %309, %cst_57 [1] : vector<1x32xf32> to vector<1xf32>
    %311 = vector.shape_cast %310 : vector<1xf32> to vector<1x1xf32>
    %cst_58 = arith.constant 3.200000e+01 : f32
    %312 = vector.broadcast %cst_58 : f32 to vector<1x1xf32>
    %313 = arith.divf %311, %312 : vector<1x1xf32>
    %314 = vector.broadcast %306 : vector<1x1xf32> to vector<1x32xf32>
    %315 = arith.subf %302, %314 : vector<1x32xf32>
    %cst_59 = arith.constant 9.99999974E-6 : f32
    %316 = vector.broadcast %cst_59 : f32 to vector<1x1xf32>
    %317 = arith.addf %313, %316 : vector<1x1xf32>
    %318 = math.sqrt %317 : vector<1x1xf32>
    %319 = vector.broadcast %318 : vector<1x1xf32> to vector<1x32xf32>
    %320 = arith.divf %315, %319 : vector<1x32xf32>
    %321 = arith.mulf %320, %12 : vector<1x32xf32>
    %322 = arith.addf %321, %13 : vector<1x32xf32>
    %323 = arith.mulf %322, %14 : vector<1x32xf32>
    %cst_60 = arith.constant dense<0.000000e+00> : vector<1xf32>
    %324 = vector.multi_reduction <add>, %323, %cst_60 [1] : vector<1x32xf32> to vector<1xf32>
    %325 = vector.shape_cast %324 : vector<1xf32> to vector<1x1xf32>
    %326 = arith.mulf %322, %15 : vector<1x32xf32>
    %cst_61 = arith.constant dense<0.000000e+00> : vector<1xf32>
    %327 = vector.multi_reduction <add>, %326, %cst_61 [1] : vector<1x32xf32> to vector<1xf32>
    %328 = vector.shape_cast %327 : vector<1xf32> to vector<1x1xf32>
    %329 = tpu.concatenate %325, %328 in 1 : vector<1x1xf32>, vector<1x1xf32> -> vector<1x2xf32>
    %330 = arith.addf %329, %16 : vector<1x2xf32>
    %cst_62 = arith.constant dense<0xFF800000> : vector<1xf32>
    %331 = vector.multi_reduction <maximumf>, %330, %cst_62 [1] : vector<1x2xf32> to vector<1xf32>
    %332 = vector.shape_cast %331 : vector<1xf32> to vector<1x1xf32>
    %333 = vector.broadcast %332 : vector<1x1xf32> to vector<1x2xf32>
    %334 = arith.subf %330, %333 : vector<1x2xf32>
    %335 = math.exp %334 : vector<1x2xf32>
    %cst_63 = arith.constant dense<0.000000e+00> : vector<1xf32>
    %336 = vector.multi_reduction <add>, %335, %cst_63 [1] : vector<1x2xf32> to vector<1xf32>
    %337 = vector.shape_cast %336 : vector<1xf32> to vector<1x1xf32>
    %338 = vector.broadcast %337 : vector<1x1xf32> to vector<1x2xf32>
    %339 = arith.divf %335, %338 : vector<1x2xf32>
    %340 = vector.extract_strided_slice %330 {offsets = [0, 1], sizes = [1, 1], strides = [1, 1]} : vector<1x2xf32> to vector<1x1xf32>
    %341 = vector.extract_strided_slice %330 {offsets = [0, 0], sizes = [1, 1], strides = [1, 1]} : vector<1x2xf32> to vector<1x1xf32>
    %342 = arith.cmpf ogt, %340, %341 : vector<1x1xf32>
    %343 = arith.extui %342 : vector<1x1xi1> to vector<1x1xi32>
    %344 = arith.sitofp %343 : vector<1x1xi32> to vector<1x1xf32>
    %cst_64 = arith.constant 0.000000e+00 : f32
    %345 = vector.broadcast %cst_64 : f32 to vector<8x128xf32>
    %c0_65 = arith.constant 0 : index
    %c0_66 = arith.constant 0 : index
    %346 = vector.load %arg2[%c0_65, %c0_66] : memref<8x128xf32, #tpu.memory_space<vmem>>, vector<8x128xf32>
    tpu.vector_store %arg2[%c0_65, %c0_66], %345 {strides = array<i32>} : memref<8x128xf32, #tpu.memory_space<vmem>>, vector<8x128xf32>,
    %c0_67 = arith.constant 0 : index
    %c0_68 = arith.constant 0 : index
    %347 = vector.load %arg2[%c0_67, %c0_68] : memref<8x128xf32, #tpu.memory_space<vmem>>, vector<1x2xf32>
    tpu.vector_store %arg2[%c0_67, %c0_68], %330 {strides = array<i32>} : memref<8x128xf32, #tpu.memory_space<vmem>>, vector<1x2xf32>,
    %c1 = arith.constant 1 : index
    %c0_69 = arith.constant 0 : index
    %348 = vector.load %arg2[%c1, %c0_69] : memref<8x128xf32, #tpu.memory_space<vmem>>, vector<1x2xf32>
    tpu.vector_store %arg2[%c1, %c0_69], %339 {strides = array<i32>} : memref<8x128xf32, #tpu.memory_space<vmem>>, vector<1x2xf32>,
    %c2 = arith.constant 2 : index
    %c0_70 = arith.constant 0 : index
    %349 = vector.load %arg2[%c2, %c0_70] : memref<8x128xf32, #tpu.memory_space<vmem>>, vector<1x1xf32>
    tpu.vector_store %arg2[%c2, %c0_70], %344 {strides = array<i32>} : memref<8x128xf32, #tpu.memory_space<vmem>>, vector<1x1xf32>,
    return
  }
}

</mosaic_0001>

<llo_original>
// kernel: wikg_forward.1
$region0: #{wikg_forward.1}
  #allocation0 [shape = 'u32[]', space=smem, size = 0x4, offset = 0x4, fixed_abs, tag = 'smem constant byte address 0x4 - core index']
  #allocation1 [shape = 'u32[144,128]{1,0:T(1,128)}', space=vmem, size = 0x12000, scoped, tag = 'internal scratch']
  %s0 = inlined_call_operand.vmem [shape: f32[8,16], index: 0, kind: input, shape index: {}]
  %s1 = inlined_call_operand.vmem [shape: f32[128,64], index: 1, kind: input, shape index: {}]
  %s2 = inlined_call_operand.vmem [shape: f32[8,128], index: 2, kind: output, shape index: {}]
  %s3 = sld [smem:[#allocation0]]
  $region18: #{wikg_forward.1} parent=0
    _
  %s5 = ssub.s32 1, %s3
  %s6 = scalar_select 0, %s5, %s3
  // Predicated region
  $region2: #{wikg_forward.1} parent=0 // pred_check
    _
  $region3: #{wikg_forward.1} parent=0 // pred_check_branch
    %8 = sbr.rel (0) target = $region5
  $region4: #{wikg_forward.1} parent=0 // pred_region
    _
  $region5: #{wikg_forward.1} parent=0 // pred_fallthru
    _
  // Predicated region
  $region6: #{wikg_forward.1} parent=0 // pred_check
    _
  $region7: #{wikg_forward.1} parent=0 // pred_check_branch
    %10 = sbr.rel (0) target = $region9
  $region8: #{wikg_forward.1} parent=0 // pred_region
    _
  $region9: #{wikg_forward.1} parent=0 // pred_fallthru
    _
  %v11 = vld [vmem:[%s0] sm:$0xff]
  %v12 = vld [vmem:[%s1] sm:$0xff]
  %v13 = vld [vmem:[%s1 + $0x8] sm:$0xff]
  %v14 = vld [vmem:[%s1 + $0x10] sm:$0xff]
  %v15 = vld [vmem:[%s1 + $0x18] sm:$0xff]
  %v16 = vld [vmem:[%s1 + $0x20] sm:$0xff]
  %v17 = vld [vmem:[%s1 + $0x28] sm:$0xff]
  %v18 = vld [vmem:[%s1 + $0x30] sm:$0xff]
  %v19 = vld [vmem:[%s1 + $0x38] sm:$0xff]
  %v20 = vld [vmem:[%s1 + $0x40] sm:$0xff]
  %v21 = vld [vmem:[%s1 + $0x48] sm:$0xff]
  %v22 = vld [vmem:[%s1 + $0x50] sm:$0xff]
  %v23 = vld [vmem:[%s1 + $0x58] sm:$0xff]
  %v24 = vld [vmem:[%s1 + $0x60] sm:$0xff]
  %v25 = vld [vmem:[%s1 + $0x68] sm:$0xff]
  %v26 = vld [vmem:[%s1 + $0x70] sm:$0xff]
  %v27 = vld [vmem:[%s1 + $0x78] sm:$0xff]
  %v28 = vlaneseq
  %v29 = vshrl.u32 %v28, 7
  %v30 = vsub.s32 0, %v29
  %v31 = vrot.slane %v26, %v30
  %vm32 = vcmask 130048
  %v34 = vsel %vm32, %v11, 0
  %36 = vmatprep.subr.mxu0 0.0
  %37 = vmatpush1.msra.mxu0 %v24
  %38 = vmatprep.subr.mxu0 0.0
  %39 = vmatpush1.msra.mxu0 %v25
  %40 = vmatprep.subr.mxu0 0.0
  %41 = vmatpush1.msra.mxu0 0.0
  %42 = vmatprep.subr.mxu0 0.0
  %43 = vmatpush1.msra.mxu0 0.0
  %44 = vmatprep.subr.mxu0 0.0
  %45 = vmatpush1.msra.mxu0 0.0
  %46 = vmatprep.subr.mxu0 0.0
  %47 = vmatpush1.msra.mxu0 0.0
  %48 = vmatprep.subr.mxu0 0.0
  %49 = vmatpush1.msra.mxu0 0.0
  %50 = vmatprep.subr.mxu0 0.0
  %51 = vmatpush1.msra.mxu0 0.0
  %52 = vmatprep.subr.mxu0 0.0
  %53 = vmatpush1.msra.mxu0 0.0
  %54 = vmatprep.subr.mxu0 0.0
  %55 = vmatpush1.msra.mxu0 0.0
  %56 = vmatprep.subr.mxu0 0.0
  %57 = vmatpush1.msra.mxu0 0.0
  %58 = vmatprep.subr.mxu0 0.0
  %59 = vmatpush1.msra.mxu0 0.0
  %60 = vmatprep.subr.mxu0 0.0
  %61 = vmatpush1.msra.mxu0 0.0
  %62 = vmatprep.subr.mxu0 0.0
  %63 = vmatpush1.msra.mxu0 0.0
  %64 = vmatprep.subr.mxu0 0.0
  %65 = vmatpush1.msra.mxu0 0.0
  %66 = vmatprep.subr.mxu0 0.0
  %67 = vmatpush1.msra.mxu0 0.0
  %68 = vmatprep.subr.mxu0 0.0
  %69 = vmatpush1.msra.mxu0 0.0
  %70 = vmatprep.subr.mxu0 0.0
  %71 = vmatpush1.msra.mxu0 0.0
  %72 = vmatprep.subr.mxu0 0.0
  %73 = vmatpush1.msra.mxu0 0.0
  %74 = vmatprep.subr.mxu0 0.0
  %75 = vmatpush1.msra.mxu0 0.0
  %76 = vmatprep.subr.mxu0 0.0
  %77 = vmatpush1.msra.mxu0 0.0
  %78 = vmatprep.subr.mxu0 0.0
  %79 = vmatpush1.msra.mxu0 0.0
  %80 = vmatprep.subr.mxu0 0.0
  %81 = vmatpush1.msra.mxu0 0.0
  %82 = vmatprep.subr.mxu0 0.0
  %83 = vmatpush1.msra.mxu0 0.0
  %84 = vmatprep.subr.mxu0 0.0
  %85 = vmatpush1.msra.mxu0 0.0
  %86 = vmatprep.subr.mxu0 0.0
  %87 = vmatpush1.msra.mxu0 0.0
  %88 = vmatprep.subr.mxu0 0.0
  %89 = vmatpush1.msra.mxu0 0.0
  %90 = vmatprep.subr.mxu0 0.0
  %91 = vmatpush1.msra.mxu0 0.0
  %92 = vmatprep.subr.mxu0 0.0
  %93 = vmatpush1.msra.mxu0 0.0
  %94 = vmatprep.subr.mxu0 0.0
  %95 = vmatpush1.msra.mxu0 0.0
  %96 = vmatprep.subr.mxu0 0.0
  %97 = vmatpush1.msra.mxu0 0.0
  %98 = vmatprep.subr.mxu0 0.0
  %99 = vmatpush1.msra.mxu0 0.0
  %100 = vmatprep.mubr.f32.mxu0 0.0
  %101 = vmatmul.mubr.f32.gmra.mrb[0].mxu0 %v34
  %v102 = vpop.f32.mrb[0].mxu0
  %v103 = vadd.f32 %v31, %v102
  %v104 = vpop.f32.mrb[0].mxu0
  %105 = vdwg.mxu0
  %vm106 = vcmp.ge.f32.partialorder %v103, 0.0
  %v107 = vmul.f32 %v103, 0.01
  %v108 = vsel %vm106, %v103, %v107
  %vm109 = vcmask 261120
  %v110 = vsel %vm109, %v108, 0.0
  %v111 = vrot.slane %v110, 4
  %v112 = vadd.f32 %v110, %v111
  %v113 = vrot.slane %v112, 2
  %v114 = vadd.f32 %v112, %v113
  %v115 = vrot.slane %v114, 1
  %v116 = vadd.f32 %v114, %v115
  %v117 = vrcp.pop 8.0
  %v118 = vmul.f32 %v116, %v117
  %v119 = vadd.f32 %v108, %v118
  %v120 = vmul.f32 %v119, 0.5
  %v121 = vlaneseq
  %v122 = vshrl.u32 %v121, 7
  %v123 = vsub.s32 1, %v122
  %v124 = vrot.slane %v26, %v123
  %v126 = vsel %vm109, %v120, 0
  %128 = vmatprep.subr.mxu0 0.0
  %129 = vmatpush1.msra.mxu0 %v12
  %130 = vmatprep.subr.mxu0 0.0
  %131 = vmatpush1.msra.mxu0 %v13
  %132 = vmatprep.subr.mxu0 0.0
  %133 = vmatpush1.msra.mxu0 %v14
  %134 = vmatprep.subr.mxu0 0.0
  %135 = vmatpush1.msra.mxu0 %v15
  %136 = vmatprep.subr.mxu0 0.0
  %137 = vmatpush1.msra.mxu0 0.0
  %138 = vmatprep.subr.mxu0 0.0
  %139 = vmatpush1.msra.mxu0 0.0
  %140 = vmatprep.subr.mxu0 0.0
  %141 = vmatpush1.msra.mxu0 0.0
  %142 = vmatprep.subr.mxu0 0.0
  %143 = vmatpush1.msra.mxu0 0.0
  %144 = vmatprep.subr.mxu0 0.0
  %145 = vmatpush1.msra.mxu0 0.0
  %146 = vmatprep.subr.mxu0 0.0
  %147 = vmatpush1.msra.mxu0 0.0
  %148 = vmatprep.subr.mxu0 0.0
  %149 = vmatpush1.msra.mxu0 0.0
  %150 = vmatprep.subr.mxu0 0.0
  %151 = vmatpush1.msra.mxu0 0.0
  %152 = vmatprep.subr.mxu0 0.0
  %153 = vmatpush1.msra.mxu0 0.0
  %154 = vmatprep.subr.mxu0 0.0
  %155 = vmatpush1.msra.mxu0 0.0
  %156 = vmatprep.subr.mxu0 0.0
  %157 = vmatpush1.msra.mxu0 0.0
  %158 = vmatprep.subr.mxu0 0.0
  %159 = vmatpush1.msra.mxu0 0.0
  %160 = vmatprep.subr.mxu0 0.0
  %161 = vmatpush1.msra.mxu0 0.0
  %162 = vmatprep.subr.mxu0 0.0
  %163 = vmatpush1.msra.mxu0 0.0
  %164 = vmatprep.subr.mxu0 0.0
  %165 = vmatpush1.msra.mxu0 0.0
  %166 = vmatprep.subr.mxu0 0.0
  %167 = vmatpush1.msra.mxu0 0.0
  %168 = vmatprep.subr.mxu0 0.0
  %169 = vmatpush1.msra.mxu0 0.0
  %170 = vmatprep.subr.mxu0 0.0
  %171 = vmatpush1.msra.mxu0 0.0
  %172 = vmatprep.subr.mxu0 0.0
  %173 = vmatpush1.msra.mxu0 0.0
  %174 = vmatprep.subr.mxu0 0.0
  %175 = vmatpush1.msra.mxu0 0.0
  %176 = vmatprep.subr.mxu0 0.0
  %177 = vmatpush1.msra.mxu0 0.0
  %178 = vmatprep.subr.mxu0 0.0
  %179 = vmatpush1.msra.mxu0 0.0
  %180 = vmatprep.subr.mxu0 0.0
  %181 = vmatpush1.msra.mxu0 0.0
  %182 = vmatprep.subr.mxu0 0.0
  %183 = vmatpush1.msra.mxu0 0.0
  %184 = vmatprep.subr.mxu0 0.0
  %185 = vmatpush1.msra.mxu0 0.0
  %186 = vmatprep.subr.mxu0 0.0
  %187 = vmatpush1.msra.mxu0 0.0
  %188 = vmatprep.subr.mxu0 0.0
  %189 = vmatpush1.msra.mxu0 0.0
  %190 = vmatprep.subr.mxu0 0.0
  %191 = vmatpush1.msra.mxu0 0.0
  %192 = vmatprep.mubr.f32.mxu0 0.0
  %193 = vmatmul.mubr.f32.gmra.mrb[0].mxu0 %v126
  %v194 = vpop.f32.mrb[0].mxu0
  %v195 = vadd.f32 %v124, %v194
  %v196 = vpop.f32.mrb[0].mxu0
  %197 = vdwg.mxu0
  %v198 = vmul.f32 %v195, 0.17677669
  %200 = vrot.lane.b32.xlu0 %v195, 96
  %v201 = vpop.permute.xlu0 %200
  %v203 = vsel %vm109, %v198, 0
  %v205 = vsel %vm109, %v201, 0
  %207 = vmatprep.subr.mxu0 0.0
  %208 = vmatpush1.xpose.msra.mxu0 %v205
  %209 = vmatprep.subr.mxu0 0.0
  %210 = vmatpush1.xpose.msra.mxu0 0.0
  %211 = vmatprep.subr.mxu0 0.0
  %212 = vmatpush1.xpose.msra.mxu0 0.0
  %213 = vmatprep.subr.mxu0 0.0
  %214 = vmatpush1.xpose.msra.mxu0 0.0
  %215 = vmatprep.subr.mxu0 0.0
  %216 = vmatpush1.xpose.msra.mxu0 0.0
  %217 = vmatprep.subr.mxu0 0.0
  %218 = vmatpush1.xpose.msra.mxu0 0.0
  %219 = vmatprep.subr.mxu0 0.0
  %220 = vmatpush1.xpose.msra.mxu0 0.0
  %221 = vmatprep.subr.mxu0 0.0
  %222 = vmatpush1.xpose.msra.mxu0 0.0
  %223 = vmatprep.subr.mxu0 0.0
  %224 = vmatpush1.xpose.msra.mxu0 0.0
  %225 = vmatprep.subr.mxu0 0.0
  %226 = vmatpush1.xpose.msra.mxu0 0.0
  %227 = vmatprep.subr.mxu0 0.0
  %228 = vmatpush1.xpose.msra.mxu0 0.0
  %229 = vmatprep.subr.mxu0 0.0
  %230 = vmatpush1.xpose.msra.mxu0 0.0
  %231 = vmatprep.subr.mxu0 0.0
  %232 = vmatpush1.xpose.msra.mxu0 0.0
  %233 = vmatprep.subr.mxu0 0.0
  %234 = vmatpush1.xpose.msra.mxu0 0.0
  %235 = vmatprep.subr.mxu0 0.0
  %236 = vmatpush1.xpose.msra.mxu0 0.0
  %237 = vmatprep.subr.mxu0 0.0
  %238 = vmatpush1.xpose.msra.mxu0 0.0
  %239 = vmatprep.subr.mxu0 0.0
  %240 = vmatpush1.xpose.msra.mxu0 0.0
  %241 = vmatprep.subr.mxu0 0.0
  %242 = vmatpush1.xpose.msra.mxu0 0.0
  %243 = vmatprep.subr.mxu0 0.0
  %244 = vmatpush1.xpose.msra.mxu0 0.0
  %245 = vmatprep.subr.mxu0 0.0
  %246 = vmatpush1.xpose.msra.mxu0 0.0
  %247 = vmatprep.subr.mxu0 0.0
  %248 = vmatpush1.xpose.msra.mxu0 0.0
  %249 = vmatprep.subr.mxu0 0.0
  %250 = vmatpush1.xpose.msra.mxu0 0.0
  %251 = vmatprep.subr.mxu0 0.0
  %252 = vmatpush1.xpose.msra.mxu0 0.0
  %253 = vmatprep.subr.mxu0 0.0
  %254 = vmatpush1.xpose.msra.mxu0 0.0
  %255 = vmatprep.subr.mxu0 0.0
  %256 = vmatpush1.xpose.msra.mxu0 0.0
  %257 = vmatprep.subr.mxu0 0.0
  %258 = vmatpush1.xpose.msra.mxu0 0.0
  %259 = vmatprep.subr.mxu0 0.0
  %260 = vmatpush1.xpose.msra.mxu0 0.0
  %261 = vmatprep.subr.mxu0 0.0
  %262 = vmatpush1.xpose.msra.mxu0 0.0
  %263 = vmatprep.subr.mxu0 0.0
  %264 = vmatpush1.xpose.msra.mxu0 0.0
  %265 = vmatprep.subr.mxu0 0.0
  %266 = vmatpush1.xpose.msra.mxu0 0.0
  %267 = vmatprep.subr.mxu0 0.0
  %268 = vmatpush1.xpose.msra.mxu0 0.0
  %269 = vmatprep.subr.mxu0 0.0
  %270 = vmatpush1.xpose.msra.mxu0 0.0
  %271 = vmatprep.mubr.f32.mxu0 0.0
  %272 = vmatmul.mubr.f32.gmra.mrb[0].mxu0 %v203
  %v273 = vpop.f32.mrb[0].mxu0
  %v274 = vadd.f32 0.0, %v273
  %v275 = vpop.f32.mrb[0].mxu0
  %276 = vdwg.mxu0
  %v277 = vlaneseq
  %v278 = vand.u32 %v277, 127
  %280 = vset.pattern.permute.xlu0 0
  %281 = vperm.xlu0 %280, %v274
  %v282 = vpop.permute.xlu0 %281
  %vm284 = vcmp.gt.f32.partialorder %v282, %v274
  %vm285 = vcmp.eq.f32.partialorder %v282, %v274
  %vm286 = vcmp.gt.s32.totalorder %v278, 0
  %vm287 = vmand %vm285, %vm286
  %vm288 = vmor %vm284, %vm287
  %v289 = vsel %vm288, 1, 0
  %290 = vset.pattern.permute.xlu0 1
  %291 = vperm.xlu0 %290, %v274
  %v292 = vpop.permute.xlu0 %291
  %vm294 = vcmp.gt.f32.partialorder %v292, %v274
  %vm295 = vcmp.eq.f32.partialorder %v292, %v274
  %vm296 = vcmp.gt.s32.totalorder %v278, 1
  %vm297 = vmand %vm295, %vm296
  %vm298 = vmor %vm294, %vm297
  %v299 = vsel %vm298, 1, 0
  %v300 = vadd.s32 %v289, %v299
  %301 = vset.pattern.permute.xlu0 2
  %302 = vperm.xlu0 %301, %v274
  %v303 = vpop.permute.xlu0 %302
  %vm305 = vcmp.gt.f32.partialorder %v303, %v274
  %vm306 = vcmp.eq.f32.partialorder %v303, %v274
  %vm307 = vcmp.gt.s32.totalorder %v278, 2
  %vm308 = vmand %vm306, %vm307
  %vm309 = vmor %vm305, %vm308
  %v310 = vsel %vm309, 1, 0
  %v311 = vadd.s32 %v300, %v310
  %312 = vset.pattern.permute.xlu0 3
  %313 = vperm.xlu0 %312, %v274
  %v314 = vpop.permute.xlu0 %313
  %vm316 = vcmp.gt.f32.partialorder %v314, %v274
  %vm317 = vcmp.eq.f32.partialorder %v314, %v274
  %vm318 = vcmp.gt.s32.totalorder %v278, 3
  %vm319 = vmand %vm317, %vm318
  %vm320 = vmor %vm316, %vm319
  %v321 = vsel %vm320, 1, 0
  %v322 = vadd.s32 %v311, %v321
  %323 = vset.pattern.permute.xlu0 4
  %324 = vperm.xlu0 %323, %v274
  %v325 = vpop.permute.xlu0 %324
  %vm327 = vcmp.gt.f32.partialorder %v325, %v274
  %vm328 = vcmp.eq.f32.partialorder %v325, %v274
  %vm329 = vcmp.gt.s32.totalorder %v278, 4
  %vm330 = vmand %vm328, %vm329
  %vm331 = vmor %vm327, %vm330
  %v332 = vsel %vm331, 1, 0
  %v333 = vadd.s32 %v322, %v332
  %334 = vset.pattern.permute.xlu0 5
  %335 = vperm.xlu0 %334, %v274
  %v336 = vpop.permute.xlu0 %335
  %vm338 = vcmp.gt.f32.partialorder %v336, %v274
  %vm339 = vcmp.eq.f32.partialorder %v336, %v274
  %vm340 = vcmp.gt.s32.totalorder %v278, 5
  %vm341 = vmand %vm339, %vm340
  %vm342 = vmor %vm338, %vm341
  %v343 = vsel %vm342, 1, 0
  %v344 = vadd.s32 %v333, %v343
  %345 = vset.pattern.permute.xlu0 6
  %346 = vperm.xlu0 %345, %v274
  %v347 = vpop.permute.xlu0 %346
  %vm349 = vcmp.gt.f32.partialorder %v347, %v274
  %vm350 = vcmp.eq.f32.partialorder %v347, %v274
  %vm351 = vcmp.gt.s32.totalorder %v278, 6
  %vm352 = vmand %vm350, %vm351
  %vm353 = vmor %vm349, %vm352
  %v354 = vsel %vm353, 1, 0
  %v355 = vadd.s32 %v344, %v354
  %356 = vset.pattern.permute.xlu0 7
  %357 = vperm.xlu0 %356, %v274
  %v358 = vpop.permute.xlu0 %357
  %vm360 = vcmp.gt.f32.partialorder %v358, %v274
  %vm361 = vcmp.eq.f32.partialorder %v358, %v274
  %vm362 = vcmp.gt.s32.totalorder %v278, 7
  %vm363 = vmand %vm361, %vm362
  %vm364 = vmor %vm360, %vm363
  %v365 = vsel %vm364, 1, 0
  %v366 = vadd.s32 %v355, %v365
  %vm367 = vcmp.eq.s32.totalorder %v366, 0
  %vm368 = vcmp.eq.s32.totalorder %v366, 1
  %vm369 = vcmp.eq.s32.totalorder %v366, 2
  %vm370 = vcmp.eq.s32.totalorder %v366, 3
  %v371 = vsel %vm367, %v274, 0.0
  %vm372 = vcmask 64512
  %v373 = vsel %vm372, %v371, 0.0
  %374 = vadd.xlane.f32.xlu0 %v373
  %v375 = vpop.xlane.xlu0 %374
  %v376 = vsel %vm368, %v274, 0.0
  %v377 = vsel %vm372, %v376, 0.0
  %378 = vadd.xlane.f32.xlu0 %v377
  %v379 = vpop.xlane.xlu0 %378
  %v380 = vsel %vm369, %v274, 0.0
  %v381 = vsel %vm372, %v380, 0.0
  %382 = vadd.xlane.f32.xlu0 %v381
  %v383 = vpop.xlane.xlu0 %382
  %v384 = vsel %vm370, %v274, 0.0
  %v385 = vsel %vm372, %v384, 0.0
  %386 = vadd.xlane.f32.xlu0 %v385
  %v387 = vpop.xlane.xlu0 %386
  %vm388 = vcmask 7168
  %v389 = vsel %vm388, %v375, %v379
  %vm390 = vcmask 15360
  %v391 = vsel %vm390, %v389, %v383
  %vm392 = vcmask 23552
  %v393 = vsel %vm392, %v391, %v387
  %vm394 = vcmask 31744
  %v395 = vsel %vm394, %v393, -inf
  %396 = vmax.xlane.f32.xlu0 %v395
  %v397 = vpop.xlane.xlu0 %396
  %v398 = vsub.f32 %v393, %v397
  %v399 = vmul.f32 %v398, 1.442695
  %v400 = vpow.pop %v399
  %v401 = vsel %vm394, %v400, 0.0
  %402 = vadd.xlane.f32.xlu0 %v401
  %v403 = vpop.xlane.xlu0 %402
  %v404 = vrcp.pop %v403
  %v405 = vmul.f32 %v400, %v404
  %v406 = vsel %vm367, 1, 0
  %v407 = vcvt.s32.f32 %v406
  %v408 = vsel %vm368, 1, 0
  %v409 = vcvt.s32.f32 %v408
  %v410 = vsel %vm369, 1, 0
  %v411 = vcvt.s32.f32 %v410
  %v412 = vsel %vm370, 1, 0
  %v413 = vcvt.s32.f32 %v412
  %v416 = vsel %vm372, %v407, 0
  %v419 = vsel %vm372, %v409, 0
  %v422 = vsel %vm372, %v411, 0
  %v425 = vsel %vm372, %v413, 0
  %427 = vmatprep.subr.mxu0 0.0
  %428 = vmatpush1.msra.mxu0 %v201
  %429 = vmatprep.subr.mxu0 0.0
  %430 = vmatpush1.msra.mxu0 0.0
  %431 = vmatprep.subr.mxu0 0.0
  %432 = vmatpush1.msra.mxu0 0.0
  %433 = vmatprep.subr.mxu0 0.0
  %434 = vmatpush1.msra.mxu0 0.0
  %435 = vmatprep.subr.mxu0 0.0
  %436 = vmatpush1.msra.mxu0 0.0
  %437 = vmatprep.subr.mxu0 0.0
  %438 = vmatpush1.msra.mxu0 0.0
  %439 = vmatprep.subr.mxu0 0.0
  %440 = vmatpush1.msra.mxu0 0.0
  %441 = vmatprep.subr.mxu0 0.0
  %442 = vmatpush1.msra.mxu0 0.0
  %443 = vmatprep.subr.mxu0 0.0
  %444 = vmatpush1.msra.mxu0 0.0
  %445 = vmatprep.subr.mxu0 0.0
  %446 = vmatpush1.msra.mxu0 0.0
  %447 = vmatprep.subr.mxu0 0.0
  %448 = vmatpush1.msra.mxu0 0.0
  %449 = vmatprep.subr.mxu0 0.0
  %450 = vmatpush1.msra.mxu0 0.0
  %451 = vmatprep.subr.mxu0 0.0
  %452 = vmatpush1.msra.mxu0 0.0
  %453 = vmatprep.subr.mxu0 0.0
  %454 = vmatpush1.msra.mxu0 0.0
  %455 = vmatprep.subr.mxu0 0.0
  %456 = vmatpush1.msra.mxu0 0.0
  %457 = vmatprep.subr.mxu0 0.0
  %458 = vmatpush1.msra.mxu0 0.0
  %459 = vmatprep.subr.mxu0 0.0
  %460 = vmatpush1.msra.mxu0 0.0
  %461 = vmatprep.subr.mxu0 0.0
  %462 = vmatpush1.msra.mxu0 0.0
  %463 = vmatprep.subr.mxu0 0.0
  %464 = vmatpush1.msra.mxu0 0.0
  %465 = vmatprep.subr.mxu0 0.0
  %466 = vmatpush1.msra.mxu0 0.0
  %467 = vmatprep.subr.mxu0 0.0
  %468 = vmatpush1.msra.mxu0 0.0
  %469 = vmatprep.subr.mxu0 0.0
  %470 = vmatpush1.msra.mxu0 0.0
  %471 = vmatprep.subr.mxu0 0.0
  %472 = vmatpush1.msra.mxu0 0.0
  %473 = vmatprep.subr.mxu0 0.0
  %474 = vmatpush1.msra.mxu0 0.0
  %475 = vmatprep.subr.mxu0 0.0
  %476 = vmatpush1.msra.mxu0 0.0
  %477 = vmatprep.subr.mxu0 0.0
  %478 = vmatpush1.msra.mxu0 0.0
  %479 = vmatprep.subr.mxu0 0.0
  %480 = vmatpush1.msra.mxu0 0.0
  %481 = vmatprep.subr.mxu0 0.0
  %482 = vmatpush1.msra.mxu0 0.0
  %483 = vmatprep.subr.mxu0 0.0
  %484 = vmatpush1.msra.mxu0 0.0
  %485 = vmatprep.subr.mxu0 0.0
  %486 = vmatpush1.msra.mxu0 0.0
  %487 = vmatprep.subr.mxu0 0.0
  %488 = vmatpush1.msra.mxu0 0.0
  %489 = vmatprep.subr.mxu0 0.0
  %490 = vmatpush1.msra.mxu0 0.0
  %491 = vmatprep.mubr.f32.mxu0 0.0
  %492 = vmatmul.mubr.f32.gmra.mrb[0].mxu0 %v416
  %v493 = vpop.f32.mrb[0].mxu0
  %v494 = vadd.f32 0.0, %v493
  %v495 = vpop.f32.mrb[0].mxu0
  %496 = vmatprep.mubr.f32.mxu0 0.0
  %497 = vmatmul.mubr.f32.gmra.mrb[0].mxu0 %v419
  %v498 = vpop.f32.mrb[0].mxu0
  %v499 = vadd.f32 0.0, %v498
  %v500 = vpop.f32.mrb[0].mxu0
  %501 = vmatprep.mubr.f32.mxu0 0.0
  %502 = vmatmul.mubr.f32.gmra.mrb[0].mxu0 %v422
  %v503 = vpop.f32.mrb[0].mxu0
  %v504 = vadd.f32 0.0, %v503
  %v505 = vpop.f32.mrb[0].mxu0
  %506 = vmatprep.mubr.f32.mxu0 0.0
  %507 = vmatmul.mubr.f32.gmra.mrb[0].mxu0 %v425
  %v508 = vpop.f32.mrb[0].mxu0
  %v509 = vadd.f32 0.0, %v508
  %v510 = vpop.f32.mrb[0].mxu0
  %511 = vdwg.mxu0
  %v512 = vsub.f32 2.0, %v405
  %514 = vset.pattern.permute.xlu0 0
  %515 = vperm.xlu0 %514, %v512
  %v516 = vpop.permute.xlu0 %515
  %v518 = vmul.f32 %v516, %v195
  %520 = vset.pattern.permute.xlu0 0
  %521 = vperm.xlu0 %520, %v405
  %v522 = vpop.permute.xlu0 %521
  %v524 = vmul.f32 %v522, %v494
  %v525 = vadd.f32 %v518, %v524
  %526 = vset.pattern.permute.xlu0 1
  %527 = vperm.xlu0 %526, %v512
  %v528 = vpop.permute.xlu0 %527
  %v530 = vmul.f32 %v528, %v195
  %531 = vset.pattern.permute.xlu0 1
  %532 = vperm.xlu0 %531, %v405
  %v533 = vpop.permute.xlu0 %532
  %v535 = vmul.f32 %v533, %v499
  %v536 = vadd.f32 %v530, %v535
  %537 = vset.pattern.permute.xlu0 2
  %538 = vperm.xlu0 %537, %v512
  %v539 = vpop.permute.xlu0 %538
  %v541 = vmul.f32 %v539, %v195
  %542 = vset.pattern.permute.xlu0 2
  %543 = vperm.xlu0 %542, %v405
  %v544 = vpop.permute.xlu0 %543
  %v546 = vmul.f32 %v544, %v504
  %v547 = vadd.f32 %v541, %v546
  %548 = vset.pattern.permute.xlu0 3
  %549 = vperm.xlu0 %548, %v512
  %v550 = vpop.permute.xlu0 %549
  %v552 = vmul.f32 %v550, %v195
  %553 = vset.pattern.permute.xlu0 3
  %554 = vperm.xlu0 %553, %v405
  %v555 = vpop.permute.xlu0 %554
  %v557 = vmul.f32 %v555, %v509
  %v558 = vadd.f32 %v552, %v557
  %560 = vrot.lane.b32.xlu0 %v536, 32
  %v561 = vpop.permute.xlu0 %560
  %564 = vrot.lane.b32.xlu0 %v547, 64
  %v565 = vpop.permute.xlu0 %564
  %568 = vrot.lane.b32.xlu0 %v558, 96
  %v569 = vpop.permute.xlu0 %568
  %v571 = vsel %vm109, %v525, %v561
  %vm572 = vcmask 523264
  %v573 = vsel %vm572, %v571, %v565
  %vm574 = vcmask 785408
  %v575 = vsel %vm574, %v573, %v569
  %v576 = vtanh.pop %v575
  %v577 = vsel %vm109, %v494, 0.0
  %578 = vadd.xlane.f32.xlu0 %v577
  %v579 = vpop.xlane.xlu0 %578
  %v580 = vsel %vm109, %v576, 0.0
  %581 = vadd.xlane.f32.xlu0 %v580
  %v582 = vpop.xlane.xlu0 %581
  %v583 = vmul.f32 %v579, %v582
  %v584 = vsel %vm109, %v499, 0.0
  %585 = vadd.xlane.f32.xlu0 %v584
  %v586 = vpop.xlane.xlu0 %585
  %588 = vrot.lane.b32.xlu0 %v576, 96
  %v589 = vpop.permute.xlu0 %588
  %v591 = vsel %vm109, %v589, 0.0
  %592 = vadd.xlane.f32.xlu0 %v591
  %v593 = vpop.xlane.xlu0 %592
  %v594 = vmul.f32 %v586, %v593
  %v595 = vsel %vm109, %v504, 0.0
  %596 = vadd.xlane.f32.xlu0 %v595
  %v597 = vpop.xlane.xlu0 %596
  %598 = vrot.lane.b32.xlu0 %v576, 64
  %v599 = vpop.permute.xlu0 %598
  %v601 = vsel %vm109, %v599, 0.0
  %602 = vadd.xlane.f32.xlu0 %v601
  %v603 = vpop.xlane.xlu0 %602
  %v604 = vmul.f32 %v597, %v603
  %v605 = vsel %vm109, %v509, 0.0
  %606 = vadd.xlane.f32.xlu0 %v605
  %v607 = vpop.xlane.xlu0 %606
  %608 = vrot.lane.b32.xlu0 %v576, 32
  %v609 = vpop.permute.xlu0 %608
  %v611 = vsel %vm109, %v609, 0.0
  %612 = vadd.xlane.f32.xlu0 %v611
  %v613 = vpop.xlane.xlu0 %612
  %v614 = vmul.f32 %v607, %v613
  %v615 = vsel %vm388, %v583, %v594
  %v616 = vsel %vm390, %v615, %v604
  %v617 = vsel %vm392, %v616, %v614
  %v618 = vsel %vm394, %v617, -inf
  %619 = vmax.xlane.f32.xlu0 %v618
  %v620 = vpop.xlane.xlu0 %619
  %v621 = vsub.f32 %v617, %v620
  %v622 = vmul.f32 %v621, 1.442695
  %v623 = vpow.pop %v622
  %v624 = vsel %vm394, %v623, 0.0
  %625 = vadd.xlane.f32.xlu0 %v624
  %v626 = vpop.xlane.xlu0 %625
  %v627 = vrcp.pop %v626
  %v628 = vmul.f32 %v623, %v627
  %630 = vset.pattern.permute.xlu0 0
  %631 = vperm.xlu0 %630, %v628
  %v632 = vpop.permute.xlu0 %631
  %v634 = vmul.f32 %v632, %v494
  %635 = vset.pattern.permute.xlu0 1
  %636 = vperm.xlu0 %635, %v628
  %v637 = vpop.permute.xlu0 %636
  %v639 = vmul.f32 %v637, %v499
  %v640 = vadd.f32 %v634, %v639
  %641 = vset.pattern.permute.xlu0 2
  %642 = vperm.xlu0 %641, %v628
  %v643 = vpop.permute.xlu0 %642
  %v645 = vmul.f32 %v643, %v504
  %v646 = vadd.f32 %v640, %v645
  %647 = vset.pattern.permute.xlu0 3
  %648 = vperm.xlu0 %647, %v628
  %v649 = vpop.permute.xlu0 %648
  %v651 = vmul.f32 %v649, %v509
  %v652 = vadd.f32 %v646, %v651
  %v653 = vadd.f32 %v195, %v652
  %v654 = vmul.f32 %v195, %v652
  %v655 = vlaneseq
  %v656 = vshrl.u32 %v655, 7
  %v657 = vsub.s32 2, %v656
  %v658 = vrot.slane %v26, %v657
  %v660 = vsel %vm109, %v653, 0
  %v663 = vsel %vm109, %v654, 0
  %665 = vmatprep.subr.mxu0 0.0
  %666 = vmatpush1.msra.mxu0 %v16
  %667 = vmatprep.subr.mxu0 0.0
  %668 = vmatpush1.msra.mxu0 %v17
  %669 = vmatprep.subr.mxu0 0.0
  %670 = vmatpush1.msra.mxu0 %v18
  %671 = vmatprep.subr.mxu0 0.0
  %672 = vmatpush1.msra.mxu0 %v19
  %673 = vmatprep.subr.mxu0 0.0
  %674 = vmatpush1.msra.mxu0 0.0
  %675 = vmatprep.subr.mxu0 0.0
  %676 = vmatpush1.msra.mxu0 0.0
  %677 = vmatprep.subr.mxu0 0.0
  %678 = vmatpush1.msra.mxu0 0.0
  %679 = vmatprep.subr.mxu0 0.0
  %680 = vmatpush1.msra.mxu0 0.0
  %681 = vmatprep.subr.mxu0 0.0
  %682 = vmatpush1.msra.mxu0 0.0
  %683 = vmatprep.subr.mxu0 0.0
  %684 = vmatpush1.msra.mxu0 0.0
  %685 = vmatprep.subr.mxu0 0.0
  %686 = vmatpush1.msra.mxu0 0.0
  %687 = vmatprep.subr.mxu0 0.0
  %688 = vmatpush1.msra.mxu0 0.0
  %689 = vmatprep.subr.mxu0 0.0
  %690 = vmatpush1.msra.mxu0 0.0
  %691 = vmatprep.subr.mxu0 0.0
  %692 = vmatpush1.msra.mxu0 0.0
  %693 = vmatprep.subr.mxu0 0.0
  %694 = vmatpush1.msra.mxu0 0.0
  %695 = vmatprep.subr.mxu0 0.0
  %696 = vmatpush1.msra.mxu0 0.0
  %697 = vmatprep.subr.mxu0 0.0
  %698 = vmatpush1.msra.mxu0 0.0
  %699 = vmatprep.subr.mxu0 0.0
  %700 = vmatpush1.msra.mxu0 0.0
  %701 = vmatprep.subr.mxu0 0.0
  %702 = vmatpush1.msra.mxu0 0.0
  %703 = vmatprep.subr.mxu0 0.0
  %704 = vmatpush1.msra.mxu0 0.0
  %705 = vmatprep.subr.mxu0 0.0
  %706 = vmatpush1.msra.mxu0 0.0
  %707 = vmatprep.subr.mxu0 0.0
  %708 = vmatpush1.msra.mxu0 0.0
  %709 = vmatprep.subr.mxu0 0.0
  %710 = vmatpush1.msra.mxu0 0.0
  %711 = vmatprep.subr.mxu0 0.0
  %712 = vmatpush1.msra.mxu0 0.0
  %713 = vmatprep.subr.mxu0 0.0
  %714 = vmatpush1.msra.mxu0 0.0
  %715 = vmatprep.subr.mxu0 0.0
  %716 = vmatpush1.msra.mxu0 0.0
  %717 = vmatprep.subr.mxu0 0.0
  %718 = vmatpush1.msra.mxu0 0.0
  %719 = vmatprep.subr.mxu0 0.0
  %720 = vmatpush1.msra.mxu0 0.0
  %721 = vmatprep.subr.mxu0 0.0
  %722 = vmatpush1.msra.mxu0 0.0
  %723 = vmatprep.subr.mxu0 0.0
  %724 = vmatpush1.msra.mxu0 0.0
  %725 = vmatprep.subr.mxu0 0.0
  %726 = vmatpush1.msra.mxu0 0.0
  %727 = vmatprep.subr.mxu0 0.0
  %728 = vmatpush1.msra.mxu0 0.0
  %729 = vmatprep.mubr.f32.mxu0 0.0
  %730 = vmatmul.mubr.f32.gmra.mrb[0].mxu0 %v660
  %v731 = vpop.f32.mrb[0].mxu0
  %v732 = vadd.f32 %v658, %v731
  %v733 = vpop.f32.mrb[0].mxu0
  %734 = vmatprep.mubr.f32.mxu0 0.0
  %735 = vmatmul.mubr.f32.gmra.mrb[0].mxu0 %v663
  %v736 = vpop.f32.mrb[0].mxu0
  %v737 = vadd.f32 %v658, %v736
  %v738 = vpop.f32.mrb[0].mxu0
  %739 = vdwg.mxu0
  %vm740 = vcmp.ge.f32.partialorder %v732, 0.0
  %vm741 = vcmp.ge.f32.partialorder %v737, 0.0
  %v742 = vmul.f32 %v732, 0.01
  %v743 = vmul.f32 %v737, 0.01
  %v744 = vsel %vm740, %v732, %v742
  %v745 = vsel %vm741, %v737, %v743
  %747 = vrot.lane.b32.xlu0 %v745, 96
  %v748 = vpop.permute.xlu0 %747
  %v750 = vadd.f32 %v744, %v748
  %v751 = vlaneseq
  %v752 = vshrl.u32 %v751, 7
  %v753 = vsub.s32 3, %v752
  %v754 = vrot.slane %v26, %v753
  %v756 = vsel %vm109, %v750, 0
  %758 = vmatprep.subr.mxu0 0.0
  %759 = vmatpush1.msra.mxu0 %v20
  %760 = vmatprep.subr.mxu0 0.0
  %761 = vmatpush1.msra.mxu0 %v21
  %762 = vmatprep.subr.mxu0 0.0
  %763 = vmatpush1.msra.mxu0 %v22
  %764 = vmatprep.subr.mxu0 0.0
  %765 = vmatpush1.msra.mxu0 %v23
  %766 = vmatprep.subr.mxu0 0.0
  %767 = vmatpush1.msra.mxu0 0.0
  %768 = vmatprep.subr.mxu0 0.0
  %769 = vmatpush1.msra.mxu0 0.0
  %770 = vmatprep.subr.mxu0 0.0
  %771 = vmatpush1.msra.mxu0 0.0
  %772 = vmatprep.subr.mxu0 0.0
  %773 = vmatpush1.msra.mxu0 0.0
  %774 = vmatprep.subr.mxu0 0.0
  %775 = vmatpush1.msra.mxu0 0.0
  %776 = vmatprep.subr.mxu0 0.0
  %777 = vmatpush1.msra.mxu0 0.0
  %778 = vmatprep.subr.mxu0 0.0
  %779 = vmatpush1.msra.mxu0 0.0
  %780 = vmatprep.subr.mxu0 0.0
  %781 = vmatpush1.msra.mxu0 0.0
  %782 = vmatprep.subr.mxu0 0.0
  %783 = vmatpush1.msra.mxu0 0.0
  %784 = vmatprep.subr.mxu0 0.0
  %785 = vmatpush1.msra.mxu0 0.0
  %786 = vmatprep.subr.mxu0 0.0
  %787 = vmatpush1.msra.mxu0 0.0
  %788 = vmatprep.subr.mxu0 0.0
  %789 = vmatpush1.msra.mxu0 0.0
  %790 = vmatprep.subr.mxu0 0.0
  %791 = vmatpush1.msra.mxu0 0.0
  %792 = vmatprep.subr.mxu0 0.0
  %793 = vmatpush1.msra.mxu0 0.0
  %794 = vmatprep.subr.mxu0 0.0
  %795 = vmatpush1.msra.mxu0 0.0
  %796 = vmatprep.subr.mxu0 0.0
  %797 = vmatpush1.msra.mxu0 0.0
  %798 = vmatprep.subr.mxu0 0.0
  %799 = vmatpush1.msra.mxu0 0.0
  %800 = vmatprep.subr.mxu0 0.0
  %801 = vmatpush1.msra.mxu0 0.0
  %802 = vmatprep.subr.mxu0 0.0
  %803 = vmatpush1.msra.mxu0 0.0
  %804 = vmatprep.subr.mxu0 0.0
  %805 = vmatpush1.msra.mxu0 0.0
  %806 = vmatprep.subr.mxu0 0.0
  %807 = vmatpush1.msra.mxu0 0.0
  %808 = vmatprep.subr.mxu0 0.0
  %809 = vmatpush1.msra.mxu0 0.0
  %810 = vmatprep.subr.mxu0 0.0
  %811 = vmatpush1.msra.mxu0 0.0
  %812 = vmatprep.subr.mxu0 0.0
  %813 = vmatpush1.msra.mxu0 0.0
  %814 = vmatprep.subr.mxu0 0.0
  %815 = vmatpush1.msra.mxu0 0.0
  %816 = vmatprep.subr.mxu0 0.0
  %817 = vmatpush1.msra.mxu0 0.0
  %818 = vmatprep.subr.mxu0 0.0
  %819 = vmatpush1.msra.mxu0 0.0
  %820 = vmatprep.subr.mxu0 0.0
  %821 = vmatpush1.msra.mxu0 0.0
  %822 = vmatprep.mubr.f32.mxu0 0.0
  %823 = vmatmul.mubr.f32.gmra.mrb[0].mxu0 %v756
  %v824 = vpop.f32.mrb[0].mxu0
  %v825 = vadd.f32 %v754, %v824
  %v826 = vpop.f32.mrb[0].mxu0
  %827 = vdwg.mxu0
  %vm828 = vcmp.ge.f32.partialorder %v825, 0.0
  %v829 = vmul.f32 %v825, 0.01
  %v830 = vsel %vm828, %v825, %v829
  %v831 = vlaneseq
  %v832 = vshrl.u32 %v831, 7
  %v833 = vsub.s32 4, %v832
  %v834 = vrot.slane %v26, %v833
  %v835 = vmul.f32 %v830, %v834
  %v836 = vsel %vm572, %v835, 0.0
  %837 = vadd.xlane.f32.xlu0 %v836
  %v838 = vpop.xlane.xlu0 %837
  %v839 = vlaneseq
  %v840 = vshrl.u32 %v839, 7
  %v841 = vsub.s32 5, %v840
  %v842 = vrot.slane %v26, %v841
  %v843 = vadd.f32 %v838, %v842
  %v844 = vsel %vm388, %v843, -inf
  %v845 = vrot.slane %v844, 4
  %v846 = vmax.f32 %v844, %v845
  %v847 = vrot.slane %v846, 2
  %v848 = vmax.f32 %v846, %v847
  %v849 = vrot.slane %v848, 1
  %v850 = vmax.f32 %v848, %v849
  %v851 = vsub.f32 %v843, %v850
  %v852 = vmul.f32 %v851, 1.442695
  %v853 = vpow.pop %v852
  %v854 = vsel %vm388, %v853, 0.0
  %v855 = vrot.slane %v854, 4
  %v856 = vadd.f32 %v854, %v855
  %v857 = vrot.slane %v856, 2
  %v858 = vadd.f32 %v856, %v857
  %v859 = vrot.slane %v858, 1
  %v860 = vadd.f32 %v858, %v859
  %v861 = vrcp.pop %v860
  %v862 = vmul.f32 %v853, %v861
  %864 = vset.pattern.permute.xlu0 0
  %865 = vperm.xlu0 %864, %v862
  %v866 = vpop.permute.xlu0 %865
  %v868 = vmul.f32 %v866, %v750
  %v869 = vsel %vm109, %v868, 0.0
  %v870 = vrot.slane %v869, 4
  %v871 = vadd.f32 %v869, %v870
  %v872 = vrot.slane %v871, 2
  %v873 = vadd.f32 %v871, %v872
  %v874 = vrot.slane %v873, 1
  %v875 = vadd.f32 %v873, %v874
  %v876 = vsel %vm109, %v875, 0.0
  %877 = vadd.xlane.f32.xlu0 %v876
  %v878 = vpop.xlane.xlu0 %877
  %v879 = vrcp.pop 32.0
  %v880 = vmul.f32 %v878, %v879
  %v881 = vsub.f32 %v875, %v880
  %v882 = vmul.f32 %v881, %v881
  %v883 = vsel %vm109, %v882, 0.0
  %884 = vadd.xlane.f32.xlu0 %v883
  %v885 = vpop.xlane.xlu0 %884
  %v886 = vmul.f32 %v885, %v879
  %v887 = vadd.f32 %v886, 1e-05
  %v888 = vrsqrt.pop %v887
  %v889 = vmul.f32 %v887, %v888
  %vm890 = vcmp.eq.f32.partialorder %v887, inf
  %v891 = vsel %vm890, %v887, %v889
  %vm892 = vcmp.eq.f32.partialorder %v887, 0.0
  %v893 = vand.u32 %v887, 2147483648
  %v894 = vsel %vm892, %v893, %v891
  %v895 = vrcp.pop %v894
  %v896 = vmul.f32 %v881, %v895
  %v897 = vmul.f32 %v896, %v26
  %v899 = vrot.slane %v26, 1
  %v901 = vadd.f32 %v897, %v899
  %v903 = vrot.slane %v27, 2
  %v905 = vmul.f32 %v901, %v903
  %vm906 = vcmask 260102
  %v907 = vsel %vm906, %v905, 0.0
  %908 = vadd.xlane.f32.xlu0 %v907
  %v909 = vpop.xlane.xlu0 %908
  %v910 = vrot.slane %v27, 3
  %v912 = vmul.f32 %v901, %v910
  %v913 = vsel %vm906, %v912, 0.0
  %914 = vadd.xlane.f32.xlu0 %v913
  %v915 = vpop.xlane.xlu0 %914
  %v916 = vsel %vm388, %v909, %v915
  %v917 = vrot.slane %v27, 4
  %v919 = vadd.f32 %v916, %v917
  %vm920 = vcmask 14342
  %v921 = vsel %vm920, %v919, -inf
  %922 = vmax.xlane.f32.xlu0 %v921
  %v923 = vpop.xlane.xlu0 %922
  %v924 = vsub.f32 %v919, %v923
  %v925 = vmul.f32 %v924, 1.442695
  %v926 = vpow.pop %v925
  %v927 = vsel %vm920, %v926, 0.0
  %928 = vadd.xlane.f32.xlu0 %v927
  %v929 = vpop.xlane.xlu0 %928
  %v930 = vrcp.pop %v929
  %v931 = vmul.f32 %v926, %v930
  %933 = vrot.lane.b32.xlu0 %v919, 1
  %v934 = vpop.permute.xlu0 %933
  %vm936 = vcmp.gt.f32.partialorder %v919, %v934
  %v937 = vsel %vm936, 1, 0
  %v938 = vcvt.s32.f32 %v937
  %939 = vst [vmem:[%s2] sm:$0xff] 0.0
  %940 = vst.msk [vmem:[%s2 - $0x6] sm:$0x40] %vm920, %v919
  %941 = vst.msk [vmem:[%s2 - $0x5] sm:$0x40] %vm920, %v931
  %943 = vrot.lane.b32.xlu0 %v938, 127
  %v944 = vpop.permute.xlu0 %943
  %vm946 = vcmask 6150
  %947 = vst.msk [vmem:[%s2 - $0x4] sm:$0x40] %vm946, %v944
  // Predicated region
  $region10: #{wikg_forward.1} parent=0 // pred_check
    _
  $region11: #{wikg_forward.1} parent=0 // pred_check_branch
    %949 = sbr.rel (0) target = $region13
  $region12: #{wikg_forward.1} parent=0 // pred_region
    _
  $region13: #{wikg_forward.1} parent=0 // pred_fallthru
    _
  // Predicated region
  $region14: #{wikg_forward.1} parent=0 // pred_check
    _
  $region15: #{wikg_forward.1} parent=0 // pred_check_branch
    %951 = sbr.rel (0) target = $region17
  $region16: #{wikg_forward.1} parent=0 // pred_region
    _
  $region17: #{wikg_forward.1} parent=0 // pred_fallthru
    _

</llo_original>
